<compile_context>
chip_gen: v7x
topology: tpu7x:2x2x1
jax: 0.10.0
libtpu: 0.0.40
codegen_flags: <defaults>
</compile_context>

<pallas_src>
import functools

import jax
import jax.numpy as jnp
from jax import lax
from jax.experimental import pallas as pl
from jax.experimental.pallas import tpu as pltpu


def _bottleneck_kernel(H, W, TH, WpH, CinP, CmidP, CoutP,
                       x_ref, w1_ref, b1_ref, w2_ref, b2_ref,
                       w3_ref, b3_ref, o_ref):
    # x_ref: (1, H+2, WpH, CinP)  -- whole padded image (resident across strips)
    # o_ref: (1, TH, W, CoutP)    -- one output row strip
    f32 = jnp.float32
    bf16 = jnp.bfloat16

    i = pl.program_id(1)          # row-strip index
    r0 = i * TH                   # first halo row (padded coordinates)

    # ---- load this strip's (TH+2)-row halo window of the padded input ------
    xs = x_ref[0, pl.ds(r0, TH + 2), :, :]                  # (TH+2, WpH, CinP)

    # ---- conv1 (1x1, BN1 scale folded) once over the whole padded strip ----
    m = (TH + 2) * WpH
    h1 = jnp.dot(xs.reshape(m, CinP).astype(bf16), w1_ref[...],
                 preferred_element_type=f32)                # MXU: bf16 in, f32 out
    h1 = jnp.maximum(h1 + b1_ref[...], 0.0).reshape(TH + 2, WpH, CmidP)

    # Zero the padding ring once: zero-padded x rows/cols produce ReLU(b1) != 0
    # after conv1, but the depthwise conv must see zeros there (reference pads
    # h1 with zeros).  Valid padded rows are 1..H, valid padded cols are 1..W.
    rowg = lax.broadcasted_iota(jnp.int32, (TH + 2, WpH, CmidP), 0) + r0
    colg = lax.broadcasted_iota(jnp.int32, (TH + 2, WpH, CmidP), 1)
    valid = (rowg >= 1) & (rowg <= H) & (colg >= 1) & (colg <= W)
    h1 = jnp.where(valid, h1, 0.0)

    # ---- depthwise 3x3 (BN2 scale folded): all 9 taps fused ----------------
    # dx shifts: 3 sublane-offset views of h1 (XLU). dy shifts: free leading-
    # axis slices.  Single fused expression -> no per-tap acc RMW passes.
    acc = None
    for dx in range(3):
        h1x = h1[:, dx:dx + W, :]                           # (TH+2, W, CmidP)
        for dy in range(3):
            term = h1x[dy:dy + TH] * w2_ref[dy, dx, :]      # (TH, W, CmidP)
            acc = term if acc is None else acc + term
    h2 = jnp.maximum(acc + b2_ref[0], 0.0)                  # BN2 shift + ReLU, f32

    # ---- conv3 (1x1, BN3 scale folded) + shift ------------------------------
    h3 = jnp.dot(h2.reshape(TH * W, CmidP).astype(bf16), w3_ref[...],
                 preferred_element_type=f32) + b3_ref[...]  # (TH*W, CoutP)
    h3 = h3.reshape(TH, W, CoutP)

    # ---- identity residual (reuse the loaded strip, f32) + final ReLU -------
    res = xs[1:TH + 1, 1:1 + W, :]                          # (TH, W, CinP=CoutP)
    o_ref[0] = jnp.maximum(h3 + res, 0.0).astype(o_ref.dtype)


def bottleneck_forward(x, params):
    """x: (N, H, W, Cin) float32 NHWC.

    Returns (N, H, W, CoutP) float32 where CoutP = round_up(Cout, 128); lanes
    >= Cout are exact zeros.  The channel-padding slice is left to the consumer
    (only needed when Cout is not a lane multiple) to avoid an extra HBM pass.
    """
    (w1, s1, b1, w2, s2, b2, w3, s3, b3) = params
    N, H, W, Cin = x.shape
    Cmid = w1.shape[1]
    Cout = w3.shape[1]
    assert Cin == Cout, "identity residual (downsample=None) needs Cin == Cout"

    LANE = 128
    rup = lambda c, m: ((c + m - 1) // m) * m
    CinP, CmidP, CoutP = rup(Cin, LANE), rup(Cmid, LANE), rup(Cout, LANE)
    WpH = rup(W + 2, 8)        # padded width: 1px halo each side, sublane-aligned

    # Row-strip height (1-row halo each side); must divide H.
    TH = 1
    for t in (8, 4, 2):
        if H % t == 0:
            TH = t
            break

    # ---- fold BN scales into the conv weights (host-side, once) ------------
    w1f = w1 * s1          # scale conv1 output channels (columns)
    w2f = w2 * s2          # scale depthwise channels
    w3f = w3 * s3          # scale conv3 output channels (columns)

    # ---- zero-pad channels to lane multiples; MXU weights in bf16 ----------
    pad2 = lambda a, r, c: jnp.pad(a, ((0, r - a.shape[0]), (0, c - a.shape[1])))
    w1p = pad2(w1f, CinP, CmidP).astype(jnp.bfloat16)
    w3p = pad2(w3f, CmidP, CoutP).astype(jnp.bfloat16)
    w2p = jnp.pad(w2f, ((0, 0), (0, 0), (0, CmidP - Cmid)))      # f32 (VPU)
    b1p = pad2(b1, 1, CmidP)
    b2p = pad2(b2, 1, CmidP)
    b3p = pad2(b3, 1, CoutP)

    # x: pad H by 1 each side, W by 1 left + (WpH-W-1) right, channels to lane.
    xp = jnp.pad(x, ((0, 0), (1, 1), (1, WpH - W - 1), (0, CinP - Cin)))

    kernel = functools.partial(_bottleneck_kernel, H, W, TH, WpH,
                               CinP, CmidP, CoutP)
    const = lambda a: pl.BlockSpec(a.shape, lambda n, i, nd=a.ndim: (0,) * nd)

    out = pl.pallas_call(
        kernel,
        out_shape=jax.ShapeDtypeStruct((N, H, W, CoutP), jnp.float32),
        grid_spec=pltpu.PrefetchScalarGridSpec(
            num_scalar_prefetch=0,
            grid=(N, H // TH),
            in_specs=[
                # whole padded image; same block across the strip axis -> resident
                pl.BlockSpec((1, H + 2, WpH, CinP), lambda n, i: (n, 0, 0, 0)),
                const(w1p), const(b1p),
                const(w2p), const(b2p),
                const(w3p), const(b3p),
            ],
            out_specs=pl.BlockSpec((1, TH, W, CoutP), lambda n, i: (n, i, 0, 0)),
        ),
        compiler_params=pltpu.CompilerParams(
            dimension_semantics=("parallel", "parallel")),
    )(xp, w1p, b1p, w2p, b2p, w3p, b3p)
    return out


def make_params(key, inplanes, planes, expansion):
    """Deterministic synthetic parameters; BN folded to scale/shift (eval mode)."""
    cmid = inplanes * expansion
    eps = 1e-5
    keys = jax.random.split(key, 12)

    def fold_bn(kg, kb, km, kv, c):
        gamma = 1.0 + 0.1 * jax.random.normal(kg, (c,), jnp.float32)
        beta = 0.1 * jax.random.normal(kb, (c,), jnp.float32)
        mean = 0.1 * jax.random.normal(km, (c,), jnp.float32)
        var = jnp.abs(1.0 + 0.1 * jax.random.normal(kv, (c,), jnp.float32))
        scale = gamma / jnp.sqrt(var + eps)
        shift = beta - mean * scale
        return scale.reshape(1, c), shift.reshape(1, c)

    w1 = 0.2 * jax.random.normal(keys[0], (inplanes, cmid), jnp.float32)   # conv1
    w2 = 0.2 * jax.random.normal(keys[1], (3, 3, cmid), jnp.float32)       # depthwise
    w3 = 0.2 * jax.random.normal(keys[2], (cmid, planes), jnp.float32)     # conv3
    s1, b1 = fold_bn(keys[3], keys[4], keys[5], keys[6], cmid)
    s2, b2 = fold_bn(keys[7], keys[8], keys[9], keys[10], cmid)
    s3, b3 = fold_bn(keys[11], keys[3], keys[7], keys[0], planes)
    return (w1, s1, b1, w2, s2, b2, w3, s3, b3)


def reference_forward(x, params, matmul_dtype=jnp.float32):
    """Pure-JAX reference (same math as the PyTorch module in eval mode).

    matmul_dtype=bfloat16 mirrors the kernel's MXU operand precision exactly
    (f32 accumulation), for a tight check; float32 is the exact module math.
    """
    (w1, s1, b1, w2, s2, b2, w3, s3, b3) = params
    N, H, W, Cin = x.shape
    md = matmul_dtype
    w1f = (w1 * s1).astype(md)
    w3f = (w3 * s3).astype(md)
    w2f = w2 * s2
    h1 = jnp.maximum(
        jnp.einsum('nhwc,cd->nhwd', x.astype(md), w1f,
                   preferred_element_type=jnp.float32) + b1, 0.0)
    hp = jnp.pad(h1, ((0, 0), (1, 1), (1, 1), (0, 0)))
    h2 = sum(hp[:, dy:dy + H, dx:dx + W, :] * w2f[dy, dx]
             for dy in range(3) for dx in range(3))
    h2 = jnp.maximum(h2 + b2, 0.0)
    h3 = jnp.einsum('nhwd,de->nhwe', h2.astype(md), w3f,
                    preferred_element_type=jnp.float32) + b3
    return jnp.maximum(h3 + x, 0.0)


if __name__ == "__main__":
    # Small shapes: batch=2, inplanes=planes=8, expansion=2, spatial=16x16.
    N, C, H, W = 2, 8, 16, 16
    expansion = 2

    key = jax.random.PRNGKey(0)
    kx, kp = jax.random.split(key)
    x = jax.random.normal(kx, (N, H, W, C), jnp.float32)  # NHWC
    params = make_params(kp, inplanes=C, planes=C, expansion=expansion)

    out_p = jax.block_until_ready(bottleneck_forward(x, params))
    assert out_p.shape == (N, H, W, 128)
    assert bool(jnp.all(out_p[..., C:] == 0.0)), "lane padding must stay zero"

    out = out_p[..., :C]   # consumer-side slice (C=8 is not a lane multiple here)

    # Tight check against a reference using the same bf16 MXU operand precision.
    ref_bf16 = reference_forward(x, params, matmul_dtype=jnp.bfloat16)
    assert jnp.allclose(out, ref_bf16, atol=2e-3, rtol=2e-3), "mismatch vs bf16 reference"

    # Sanity bound against the exact f32 module math (bf16 MXU operands only).
    ref_f32 = reference_forward(x, params)
    assert jnp.allclose(out, ref_f32, atol=1e-1, rtol=1e-1), "mismatch vs f32 reference"

    print("KERNEL_OK")
</pallas_src>

<mosaic_0001>
module attributes {stable_mosaic.version = 11 : i64} {
  func.func @_bottleneck_kernel(%arg0: i32, %arg1: i32, %arg2: memref<1x18x24x128xf32, #tpu.memory_space<vmem>>, %arg3: memref<128x128xbf16, #tpu.memory_space<vmem>>, %arg4: memref<1x128xf32, #tpu.memory_space<vmem>>, %arg5: memref<3x3x128xf32, #tpu.memory_space<vmem>>, %arg6: memref<1x128xf32, #tpu.memory_space<vmem>>, %arg7: memref<128x128xbf16, #tpu.memory_space<vmem>>, %arg8: memref<1x128xf32, #tpu.memory_space<vmem>>, %arg9: memref<1x8x16x128xf32, #tpu.memory_space<vmem>>) attributes {dimension_semantics = [#tpu.dimension_semantics<parallel>, #tpu.dimension_semantics<parallel>], iteration_bounds = array<i64: 2, 2>, scalar_prefetch = 0 : i64, scratch_operands = 0 : i64, tpu.core_type = #tpu.core_type<tc>, window_params = [{transform_indices = @transform_0, window_bounds = array<i64: 1, 18, 24, 128>}, {pipeline_mode = #tpu.pipeline_mode<synchronous>, transform_indices = @transform_1, window_bounds = array<i64: 128, 128>}, {pipeline_mode = #tpu.pipeline_mode<synchronous>, transform_indices = @transform_2, window_bounds = array<i64: 1, 128>}, {pipeline_mode = #tpu.pipeline_mode<synchronous>, transform_indices = @transform_3, window_bounds = array<i64: 3, 3, 128>}, {pipeline_mode = #tpu.pipeline_mode<synchronous>, transform_indices = @transform_4, window_bounds = array<i64: 1, 128>}, {pipeline_mode = #tpu.pipeline_mode<synchronous>, transform_indices = @transform_5, window_bounds = array<i64: 128, 128>}, {pipeline_mode = #tpu.pipeline_mode<synchronous>, transform_indices = @transform_6, window_bounds = array<i64: 1, 128>}, {transform_indices = @transform_7, window_bounds = array<i64: 1, 8, 16, 128>}]} {
    %c8_i32 = arith.constant 8 : i32
    %0 = arith.muli %arg1, %c8_i32 : i32
    %c0 = arith.constant 0 : index
    %1 = arith.index_cast %0 : i32 to index
    %c0_0 = arith.constant 0 : index
    %c0_1 = arith.constant 0 : index
    %2 = vector.load %arg2[%c0, %1, %c0_0, %c0_1] : memref<1x18x24x128xf32, #tpu.memory_space<vmem>>, vector<1x10x24x128xf32>
    %3 = vector.shape_cast %2 : vector<1x10x24x128xf32> to vector<10x24x128xf32>
    %4 = vector.shape_cast %3 : vector<10x24x128xf32> to vector<240x128xf32>
    %5 = arith.truncf %4 : vector<240x128xf32> to vector<240x128xbf16>
    %c0_2 = arith.constant 0 : index
    %c0_3 = arith.constant 0 : index
    %6 = vector.load %arg3[%c0_2, %c0_3] : memref<128x128xbf16, #tpu.memory_space<vmem>>, vector<128x128xbf16>
    %cst = arith.constant dense<0.000000e+00> : vector<240x128xf32>
    %7 = tpu.matmul %5, %6, %cst {dimension_numbers = #tpu.dot_dimension_numbers<[1], [0], [0], [1], [0, 0, 1, 1], [], []>} : vector<240x128xbf16>, vector<128x128xbf16>, vector<240x128xf32> -> vector<240x128xf32>
    %c0_4 = arith.constant 0 : index
    %c0_5 = arith.constant 0 : index
    %8 = vector.load %arg4[%c0_4, %c0_5] : memref<1x128xf32, #tpu.memory_space<vmem>>, vector<1x128xf32>
    %9 = vector.broadcast %8 : vector<1x128xf32> to vector<240x128xf32>
    %10 = arith.addf %7, %9 : vector<240x128xf32>
    %cst_6 = arith.constant 0.000000e+00 : f32
    %11 = vector.broadcast %cst_6 : f32 to vector<240x128xf32>
    %12 = arith.maximumf %10, %11 : vector<240x128xf32>
    %13 = vector.shape_cast %12 : vector<240x128xf32> to vector<10x24x128xf32>
    %14 = tpu.iota {dimensions = array<i32: 0>} : vector<10x24x128xi32>
    %15 = vector.broadcast %0 : i32 to vector<10x24x128xi32>
    %16 = arith.addi %14, %15 : vector<10x24x128xi32>
    %17 = tpu.iota {dimensions = array<i32: 1>} : vector<10x24x128xi32>
    %c1_i32 = arith.constant 1 : i32
    %18 = vector.broadcast %c1_i32 : i32 to vector<10x24x128xi32>
    %19 = arith.cmpi sge, %16, %18 : vector<10x24x128xi32>
    %c16_i32 = arith.constant 16 : i32
    %20 = vector.broadcast %c16_i32 : i32 to vector<10x24x128xi32>
    %21 = arith.cmpi sle, %16, %20 : vector<10x24x128xi32>
    %22 = arith.andi %19, %21 : vector<10x24x128xi1>
    %c1_i32_7 = arith.constant 1 : i32
    %23 = vector.broadcast %c1_i32_7 : i32 to vector<10x24x128xi32>
    %24 = arith.cmpi sge, %17, %23 : vector<10x24x128xi32>
    %25 = arith.andi %22, %24 : vector<10x24x128xi1>
    %c16_i32_8 = arith.constant 16 : i32
    %26 = vector.broadcast %c16_i32_8 : i32 to vector<10x24x128xi32>
    %27 = arith.cmpi sle, %17, %26 : vector<10x24x128xi32>
    %28 = arith.andi %25, %27 : vector<10x24x128xi1>
    %cst_9 = arith.constant 0.000000e+00 : f32
    %29 = vector.broadcast %cst_9 : f32 to vector<10x24x128xf32>
    %30 = arith.select %28, %13, %29 : vector<10x24x128xi1>, vector<10x24x128xf32>
    %31 = vector.extract_strided_slice %30 {offsets = [0, 0, 0], sizes = [10, 16, 128], strides = [1, 1, 1]} : vector<10x24x128xf32> to vector<10x16x128xf32>
    %32 = vector.extract_strided_slice %31 {offsets = [0, 0, 0], sizes = [8, 16, 128], strides = [1, 1, 1]} : vector<10x16x128xf32> to vector<8x16x128xf32>
    %c0_10 = arith.constant 0 : index
    %c0_11 = arith.constant 0 : index
    %c0_12 = arith.constant 0 : index
    %33 = vector.load %arg5[%c0_10, %c0_11, %c0_12] : memref<3x3x128xf32, #tpu.memory_space<vmem>>, vector<1x1x128xf32>
    %34 = vector.shape_cast %33 : vector<1x1x128xf32> to vector<128xf32>
    %35 = vector.shape_cast %34 : vector<128xf32> to vector<1x1x128xf32>
    %36 = vector.broadcast %35 : vector<1x1x128xf32> to vector<8x16x128xf32>
    %37 = arith.mulf %32, %36 : vector<8x16x128xf32>
    %38 = vector.extract_strided_slice %31 {offsets = [1, 0, 0], sizes = [8, 16, 128], strides = [1, 1, 1]} : vector<10x16x128xf32> to vector<8x16x128xf32>
    %c1 = arith.constant 1 : index
    %c0_13 = arith.constant 0 : index
    %c0_14 = arith.constant 0 : index
    %39 = vector.load %arg5[%c1, %c0_13, %c0_14] : memref<3x3x128xf32, #tpu.memory_space<vmem>>, vector<1x1x128xf32>
    %40 = vector.shape_cast %39 : vector<1x1x128xf32> to vector<128xf32>
    %41 = vector.shape_cast %40 : vector<128xf32> to vector<1x1x128xf32>
    %42 = vector.broadcast %41 : vector<1x1x128xf32> to vector<8x16x128xf32>
    %43 = arith.mulf %38, %42 : vector<8x16x128xf32>
    %44 = arith.addf %37, %43 : vector<8x16x128xf32>
    %45 = vector.extract_strided_slice %31 {offsets = [2, 0, 0], sizes = [8, 16, 128], strides = [1, 1, 1]} : vector<10x16x128xf32> to vector<8x16x128xf32>
    %c2 = arith.constant 2 : index
    %c0_15 = arith.constant 0 : index
    %c0_16 = arith.constant 0 : index
    %46 = vector.load %arg5[%c2, %c0_15, %c0_16] : memref<3x3x128xf32, #tpu.memory_space<vmem>>, vector<1x1x128xf32>
    %47 = vector.shape_cast %46 : vector<1x1x128xf32> to vector<128xf32>
    %48 = vector.shape_cast %47 : vector<128xf32> to vector<1x1x128xf32>
    %49 = vector.broadcast %48 : vector<1x1x128xf32> to vector<8x16x128xf32>
    %50 = arith.mulf %45, %49 : vector<8x16x128xf32>
    %51 = arith.addf %44, %50 : vector<8x16x128xf32>
    %52 = vector.extract_strided_slice %30 {offsets = [0, 1, 0], sizes = [10, 16, 128], strides = [1, 1, 1]} : vector<10x24x128xf32> to vector<10x16x128xf32>
    %53 = vector.extract_strided_slice %52 {offsets = [0, 0, 0], sizes = [8, 16, 128], strides = [1, 1, 1]} : vector<10x16x128xf32> to vector<8x16x128xf32>
    %c0_17 = arith.constant 0 : index
    %c1_18 = arith.constant 1 : index
    %c0_19 = arith.constant 0 : index
    %54 = vector.load %arg5[%c0_17, %c1_18, %c0_19] : memref<3x3x128xf32, #tpu.memory_space<vmem>>, vector<1x1x128xf32>
    %55 = vector.shape_cast %54 : vector<1x1x128xf32> to vector<128xf32>
    %56 = vector.shape_cast %55 : vector<128xf32> to vector<1x1x128xf32>
    %57 = vector.broadcast %56 : vector<1x1x128xf32> to vector<8x16x128xf32>
    %58 = arith.mulf %53, %57 : vector<8x16x128xf32>
    %59 = arith.addf %51, %58 : vector<8x16x128xf32>
    %60 = vector.extract_strided_slice %52 {offsets = [1, 0, 0], sizes = [8, 16, 128], strides = [1, 1, 1]} : vector<10x16x128xf32> to vector<8x16x128xf32>
    %c1_20 = arith.constant 1 : index
    %c1_21 = arith.constant 1 : index
    %c0_22 = arith.constant 0 : index
    %61 = vector.load %arg5[%c1_20, %c1_21, %c0_22] : memref<3x3x128xf32, #tpu.memory_space<vmem>>, vector<1x1x128xf32>
    %62 = vector.shape_cast %61 : vector<1x1x128xf32> to vector<128xf32>
    %63 = vector.shape_cast %62 : vector<128xf32> to vector<1x1x128xf32>
    %64 = vector.broadcast %63 : vector<1x1x128xf32> to vector<8x16x128xf32>
    %65 = arith.mulf %60, %64 : vector<8x16x128xf32>
    %66 = arith.addf %59, %65 : vector<8x16x128xf32>
    %67 = vector.extract_strided_slice %52 {offsets = [2, 0, 0], sizes = [8, 16, 128], strides = [1, 1, 1]} : vector<10x16x128xf32> to vector<8x16x128xf32>
    %c2_23 = arith.constant 2 : index
    %c1_24 = arith.constant 1 : index
    %c0_25 = arith.constant 0 : index
    %68 = vector.load %arg5[%c2_23, %c1_24, %c0_25] : memref<3x3x128xf32, #tpu.memory_space<vmem>>, vector<1x1x128xf32>
    %69 = vector.shape_cast %68 : vector<1x1x128xf32> to vector<128xf32>
    %70 = vector.shape_cast %69 : vector<128xf32> to vector<1x1x128xf32>
    %71 = vector.broadcast %70 : vector<1x1x128xf32> to vector<8x16x128xf32>
    %72 = arith.mulf %67, %71 : vector<8x16x128xf32>
    %73 = arith.addf %66, %72 : vector<8x16x128xf32>
    %74 = vector.extract_strided_slice %30 {offsets = [0, 2, 0], sizes = [10, 16, 128], strides = [1, 1, 1]} : vector<10x24x128xf32> to vector<10x16x128xf32>
    %75 = vector.extract_strided_slice %74 {offsets = [0, 0, 0], sizes = [8, 16, 128], strides = [1, 1, 1]} : vector<10x16x128xf32> to vector<8x16x128xf32>
    %c0_26 = arith.constant 0 : index
    %c2_27 = arith.constant 2 : index
    %c0_28 = arith.constant 0 : index
    %76 = vector.load %arg5[%c0_26, %c2_27, %c0_28] : memref<3x3x128xf32, #tpu.memory_space<vmem>>, vector<1x1x128xf32>
    %77 = vector.shape_cast %76 : vector<1x1x128xf32> to vector<128xf32>
    %78 = vector.shape_cast %77 : vector<128xf32> to vector<1x1x128xf32>
    %79 = vector.broadcast %78 : vector<1x1x128xf32> to vector<8x16x128xf32>
    %80 = arith.mulf %75, %79 : vector<8x16x128xf32>
    %81 = arith.addf %73, %80 : vector<8x16x128xf32>
    %82 = vector.extract_strided_slice %74 {offsets = [1, 0, 0], sizes = [8, 16, 128], strides = [1, 1, 1]} : vector<10x16x128xf32> to vector<8x16x128xf32>
    %c1_29 = arith.constant 1 : index
    %c2_30 = arith.constant 2 : index
    %c0_31 = arith.constant 0 : index
    %83 = vector.load %arg5[%c1_29, %c2_30, %c0_31] : memref<3x3x128xf32, #tpu.memory_space<vmem>>, vector<1x1x128xf32>
    %84 = vector.shape_cast %83 : vector<1x1x128xf32> to vector<128xf32>
    %85 = vector.shape_cast %84 : vector<128xf32> to vector<1x1x128xf32>
    %86 = vector.broadcast %85 : vector<1x1x128xf32> to vector<8x16x128xf32>
    %87 = arith.mulf %82, %86 : vector<8x16x128xf32>
    %88 = arith.addf %81, %87 : vector<8x16x128xf32>
    %89 = vector.extract_strided_slice %74 {offsets = [2, 0, 0], sizes = [8, 16, 128], strides = [1, 1, 1]} : vector<10x16x128xf32> to vector<8x16x128xf32>
    %c2_32 = arith.constant 2 : index
    %c2_33 = arith.constant 2 : index
    %c0_34 = arith.constant 0 : index
    %90 = vector.load %arg5[%c2_32, %c2_33, %c0_34] : memref<3x3x128xf32, #tpu.memory_space<vmem>>, vector<1x1x128xf32>
    %91 = vector.shape_cast %90 : vector<1x1x128xf32> to vector<128xf32>
    %92 = vector.shape_cast %91 : vector<128xf32> to vector<1x1x128xf32>
    %93 = vector.broadcast %92 : vector<1x1x128xf32> to vector<8x16x128xf32>
    %94 = arith.mulf %89, %93 : vector<8x16x128xf32>
    %95 = arith.addf %88, %94 : vector<8x16x128xf32>
    %c0_35 = arith.constant 0 : index
    %c0_36 = arith.constant 0 : index
    %96 = vector.load %arg6[%c0_35, %c0_36] : memref<1x128xf32, #tpu.memory_space<vmem>>, vector<1x128xf32>
    %97 = vector.shape_cast %96 : vector<1x128xf32> to vector<128xf32>
    %98 = vector.shape_cast %97 : vector<128xf32> to vector<1x1x128xf32>
    %99 = vector.broadcast %98 : vector<1x1x128xf32> to vector<8x16x128xf32>
    %100 = arith.addf %95, %99 : vector<8x16x128xf32>
    %cst_37 = arith.constant 0.000000e+00 : f32
    %101 = vector.broadcast %cst_37 : f32 to vector<8x16x128xf32>
    %102 = arith.maximumf %100, %101 : vector<8x16x128xf32>
    %103 = vector.shape_cast %102 : vector<8x16x128xf32> to vector<128x128xf32>
    %104 = arith.truncf %103 : vector<128x128xf32> to vector<128x128xbf16>
    %c0_38 = arith.constant 0 : index
    %c0_39 = arith.constant 0 : index
    %105 = vector.load %arg7[%c0_38, %c0_39] : memref<128x128xbf16, #tpu.memory_space<vmem>>, vector<128x128xbf16>
    %cst_40 = arith.constant dense<0.000000e+00> : vector<128x128xf32>
    %106 = tpu.matmul %104, %105, %cst_40 {dimension_numbers = #tpu.dot_dimension_numbers<[1], [0], [0], [1], [0, 0, 1, 1], [], []>} : vector<128x128xbf16>, vector<128x128xbf16>, vector<128x128xf32> -> vector<128x128xf32>
    %c0_41 = arith.constant 0 : index
    %c0_42 = arith.constant 0 : index
    %107 = vector.load %arg8[%c0_41, %c0_42] : memref<1x128xf32, #tpu.memory_space<vmem>>, vector<1x128xf32>
    %108 = vector.broadcast %107 : vector<1x128xf32> to vector<128x128xf32>
    %109 = arith.addf %106, %108 : vector<128x128xf32>
    %110 = vector.shape_cast %109 : vector<128x128xf32> to vector<8x16x128xf32>
    %111 = vector.extract_strided_slice %3 {offsets = [1, 1, 0], sizes = [8, 16, 128], strides = [1, 1, 1]} : vector<10x24x128xf32> to vector<8x16x128xf32>
    %112 = arith.addf %110, %111 : vector<8x16x128xf32>
    %cst_43 = arith.constant 0.000000e+00 : f32
    %113 = vector.broadcast %cst_43 : f32 to vector<8x16x128xf32>
    %114 = arith.maximumf %112, %113 : vector<8x16x128xf32>
    %c0_44 = arith.constant 0 : index
    %c0_45 = arith.constant 0 : index
    %c0_46 = arith.constant 0 : index
    %c0_47 = arith.constant 0 : index
    %115 = vector.load %arg9[%c0_44, %c0_45, %c0_46, %c0_47] : memref<1x8x16x128xf32, #tpu.memory_space<vmem>>, vector<1x8x16x128xf32>
    %116 = vector.shape_cast %115 : vector<1x8x16x128xf32> to vector<8x16x128xf32>
    %117 = vector.shape_cast %114 : vector<8x16x128xf32> to vector<1x8x16x128xf32>
    tpu.vector_store %arg9[%c0_44, %c0_45, %c0_46, %c0_47], %117 {strides = array<i32>} : memref<1x8x16x128xf32, #tpu.memory_space<vmem>>, vector<1x8x16x128xf32>,
    return
  }
  func.func @transform_0(%arg0: i32, %arg1: i32) -> (i32, i32, i32, i32) {
    %c0_i32 = arith.constant 0 : i32
    %c0_i32_0 = arith.constant 0 : i32
    %c0_i32_1 = arith.constant 0 : i32
    %c0_i32_2 = arith.constant 0 : i32
    return %arg0, %c0_i32, %c0_i32_0, %c0_i32_1 : i32, i32, i32, i32
  }
  func.func @transform_1(%arg0: i32, %arg1: i32) -> (i32, i32) {
    %c0_i32 = arith.constant 0 : i32
    %c0_i32_0 = arith.constant 0 : i32
    %c0_i32_1 = arith.constant 0 : i32
    return %c0_i32, %c0_i32_0 : i32, i32
  }
  func.func @transform_2(%arg0: i32, %arg1: i32) -> (i32, i32) {
    %c0_i32 = arith.constant 0 : i32
    %c0_i32_0 = arith.constant 0 : i32
    %c0_i32_1 = arith.constant 0 : i32
    return %c0_i32, %c0_i32_0 : i32, i32
  }
  func.func @transform_3(%arg0: i32, %arg1: i32) -> (i32, i32, i32) {
    %c0_i32 = arith.constant 0 : i32
    %c0_i32_0 = arith.constant 0 : i32
    %c0_i32_1 = arith.constant 0 : i32
    %c0_i32_2 = arith.constant 0 : i32
    return %c0_i32, %c0_i32_0, %c0_i32_1 : i32, i32, i32
  }
  func.func @transform_4(%arg0: i32, %arg1: i32) -> (i32, i32) {
    %c0_i32 = arith.constant 0 : i32
    %c0_i32_0 = arith.constant 0 : i32
    %c0_i32_1 = arith.constant 0 : i32
    return %c0_i32, %c0_i32_0 : i32, i32
  }
  func.func @transform_5(%arg0: i32, %arg1: i32) -> (i32, i32) {
    %c0_i32 = arith.constant 0 : i32
    %c0_i32_0 = arith.constant 0 : i32
    %c0_i32_1 = arith.constant 0 : i32
    return %c0_i32, %c0_i32_0 : i32, i32
  }
  func.func @transform_6(%arg0: i32, %arg1: i32) -> (i32, i32) {
    %c0_i32 = arith.constant 0 : i32
    %c0_i32_0 = arith.constant 0 : i32
    %c0_i32_1 = arith.constant 0 : i32
    return %c0_i32, %c0_i32_0 : i32, i32
  }
  func.func @transform_7(%arg0: i32, %arg1: i32) -> (i32, i32, i32, i32) {
    %c0_i32 = arith.constant 0 : i32
    %c0_i32_0 = arith.constant 0 : i32
    %c0_i32_1 = arith.constant 0 : i32
    return %arg0, %arg1, %c0_i32, %c0_i32_0 : i32, i32, i32, i32
  }
}

</mosaic_0001>

<llo_original>
// kernel: tpu_custom_call.1
$region0: #{tpu_custom_call.1}
  #allocation0 [shape = 'u32[]', space=smem, size = 0x4, offset = 0x4, fixed_abs, tag = 'smem constant byte address 0x4 - core index']
  #allocation1 [shape = 'u32[144,128]{1,0:T(1,128)}', space=vmem, size = 0x12000, scoped, tag = 'internal scratch']
  %s0 = inlined_call_operand.hbm [shape: f32[2,18,24,128], index: 0, kind: input, shape index: {}]
  %s1 = inlined_call_operand.hbm [shape: bf16[128,128], index: 1, kind: input, shape index: {}]
  %s2 = inlined_call_operand.vmem [shape: f32[1,128], index: 2, kind: input, shape index: {}]
  %s3 = inlined_call_operand.hbm [shape: f32[3,3,128], index: 3, kind: input, shape index: {}]
  %s4 = inlined_call_operand.vmem [shape: f32[1,128], index: 4, kind: input, shape index: {}]
  %s5 = inlined_call_operand.hbm [shape: bf16[128,128], index: 5, kind: input, shape index: {}]
  %s6 = inlined_call_operand.vmem [shape: f32[1,128], index: 6, kind: input, shape index: {}]
  %s7 = inlined_call_operand.hbm [shape: f32[2,16,16,128], index: 7, kind: output, shape index: {}]
  %s8 = sld [smem:[#allocation0]]
  $region77: #{tpu_custom_call.1} parent=0
    _
  %s10 = ssub.s32 1, %s8
  %s11 = scalar_select 0, %s10, %s8
  $region1: #{tpu_custom_call.1} parent=0
    #allocation2 [shape = 'u8[442368]{0}', space=vmem, size = 0x6c000, scoped, tag = 'input window, operand 0']
    #allocation3 [shape = 's32[2]{0}', space=sflag, size = 0x8, scoped, tag = 'scoped memory for tpu_custom_call.1']
    #allocation4 [shape = 's32[2]{0}', space=sflag, size = 0x8, scoped, tag = 'scoped memory for tpu_custom_call.1']
    #allocation5 [shape = 'u8[32768]{0}', space=vmem, size = 0x8000, scoped, tag = 'input window, operand 1, single buffered']
    #allocation6 [shape = 's32[1]{0}', space=sflag, size = 0x4, scoped, tag = 'scoped memory for tpu_custom_call.1']
    #allocation7 [shape = 'u8[6144]{0}', space=vmem, size = 0x1800, scoped, tag = 'input window, operand 3, single buffered']
    #allocation8 [shape = 'u8[32768]{0}', space=vmem, size = 0x8000, scoped, tag = 'input window, operand 5, single buffered']
    #allocation9 [shape = 's32[1]{0}', space=sflag, size = 0x4, scoped, tag = 'scoped memory for tpu_custom_call.1']
    #allocation10 [shape = 'u8[131072]{0}', space=vmem, size = 0x20000, scoped, tag = 'output window, operand 0']
    %12 = vsyncpa [#allocation3], 0
    %s13 = scalar_lea.sflag [#allocation3], 1
    %14 = vsyncpa %s13, 0
    %15 = vsyncpa [#allocation6], 0
    %16 = vsyncpa [#allocation9], 0
    %17 = vsyncpa [#allocation4], 0
    %s18 = scalar_lea.sflag [#allocation4], 1
    %19 = vsyncpa %s18, 0
    loop: start=0, step=1, limit=6
    $region2: #{tpu_custom_call.1} parent=1 // loop_pre_header
      _
    $region3: #{tpu_custom_call.1} parent=1 // loop_header
      %s21 = sphi 0, %s25
      %p22 = scmp.ge.s32.totalorder %s21, 6
      %s28 = sphi 0, %s40
      %s29 = sphi 0, %s36
      %s30 = sphi 0, %s28
      %s31 = sphi 0, %s29
      %s32 = sphi 0, %s30
      %s33 = sphi 0, %s31
      %s43 = sphi 0, %s45
      %s46 = sphi 0, %s43
      %s47 = sphi 0, %s46
      %s63 = sphi 0, %s47
      %s67 = sphi 0, %s67
      %s69 = sphi 0, %s67
      %s70 = sphi 0, %s69
      %s84 = sphi 0, %s70
      %s88 = sphi 0, %s88
      %s90 = sphi 0, %s88
      %s91 = sphi 0, %s90
      %s105 = sphi 0, %s91
      %s109 = sphi 0, %s109
      %s111 = sphi 0, %s109
      %s112 = sphi 0, %s111
      %s126 = sphi 0, %s112
      %s130 = sphi 0, %s130
      %s132 = sphi 0, %s130
      %s133 = sphi 0, %s132
      %s147 = sphi 0, %s133
      %s151 = sphi 0, %s151
      %s153 = sphi 0, %s151
      %s154 = sphi 0, %s153
      %s168 = sphi 0, %s154
      %s172 = sphi 0, %s172
      %s174 = sphi 0, %s172
      %s175 = sphi 0, %s174
      %s189 = sphi 0, %s175
      %s197 = sphi 0, %s199
      %s200 = sphi 0, %s197
      %s201 = sphi 0, %s200
      %s217 = sphi 0, %s201
    $region4: #{tpu_custom_call.1} parent=1 // loop_header_branch
      %24 = sbr.rel (%p22) target = $region8
    $region5: #{tpu_custom_call.1} parent=1 // loop_body
      %s26 = ssub.s32 %s21, 1
      %s27 = ssub.s32 %s21, 2
      %s34 = sadd.s32 1, %s29
      %p35 = scmp.ge.s32.totalorder %s34, 2
      %s36 = scalar_select %p35, 0, %s34
      %s37 = sadd.s32 1, %s28
      %s38 = scalar_select %p35, %s37, %s28
      %p39 = scmp.ge.s32.totalorder %s38, 2
      %s40 = scalar_select %p39, 0, %s38
      %s41 = ssub.s32 %s28, %s40
      %p42 = scmp.eq.s32.totalorder %s41, 0
      %s44 = sadd.s32 %s43, 1
      %s45 = scalar_select %p42, %s43, %s44
      %p48 = pneg %p42
      %p49 = scmp.eq.s32.totalorder %s21, 3
      %p50 = por %p48, %p49
      %p51 = scmp.ne.s32.totalorder %s43, %s46
      %p52 = scmp.eq.s32.totalorder %s21, 0
      %p53 = por %p51, %p52
      %p54 = scmp.ne.s32.totalorder %s43, %s46
      %p55 = scmp.eq.s32.totalorder %s26, 3
      %p56 = por %p54, %p55
      %p57 = scmp.ne.s32.totalorder %s46, %s47
      %p58 = scmp.eq.s32.totalorder %s26, 0
      %p59 = por %p57, %p58
      %p60 = scmp.ne.s32.totalorder %s46, %s47
      %p61 = scmp.eq.s32.totalorder %s27, 3
      %p62 = por %p60, %p61
      %p64 = scmp.ne.s32.totalorder %s47, %s63
      %p65 = scmp.eq.s32.totalorder %s27, 0
      %p66 = por %p64, %p65
      %s68 = sadd.s32 %s67, 1
      %p71 = scmp.eq.s32.totalorder %s21, 3
      %p72 = scmp.ne.s32.totalorder %s67, %s69
      %p73 = scmp.eq.s32.totalorder %s21, 0
      %p74 = por %p72, %p73
      %p75 = scmp.ne.s32.totalorder %s67, %s69
      %p76 = scmp.eq.s32.totalorder %s26, 3
      %p77 = por %p75, %p76
      %p78 = scmp.ne.s32.totalorder %s69, %s70
      %p79 = scmp.eq.s32.totalorder %s26, 0
      %p80 = por %p78, %p79
      %p81 = scmp.ne.s32.totalorder %s69, %s70
      %p82 = scmp.eq.s32.totalorder %s27, 3
      %p83 = por %p81, %p82
      %p85 = scmp.ne.s32.totalorder %s70, %s84
      %p86 = scmp.eq.s32.totalorder %s27, 0
      %p87 = por %p85, %p86
      %s89 = sadd.s32 %s88, 1
      %p92 = scmp.eq.s32.totalorder %s21, 3
      %p93 = scmp.ne.s32.totalorder %s88, %s90
      %p94 = scmp.eq.s32.totalorder %s21, 0
      %p95 = por %p93, %p94
      %p96 = scmp.ne.s32.totalorder %s88, %s90
      %p97 = scmp.eq.s32.totalorder %s26, 3
      %p98 = por %p96, %p97
      %p99 = scmp.ne.s32.totalorder %s90, %s91
      %p100 = scmp.eq.s32.totalorder %s26, 0
      %p101 = por %p99, %p100
      %p102 = scmp.ne.s32.totalorder %s90, %s91
      %p103 = scmp.eq.s32.totalorder %s27, 3
      %p104 = por %p102, %p103
      %p106 = scmp.ne.s32.totalorder %s91, %s105
      %p107 = scmp.eq.s32.totalorder %s27, 0
      %p108 = por %p106, %p107
      %s110 = sadd.s32 %s109, 1
      %p113 = scmp.eq.s32.totalorder %s21, 3
      %p114 = scmp.ne.s32.totalorder %s109, %s111
      %p115 = scmp.eq.s32.totalorder %s21, 0
      %p116 = por %p114, %p115
      %p117 = scmp.ne.s32.totalorder %s109, %s111
      %p118 = scmp.eq.s32.totalorder %s26, 3
      %p119 = por %p117, %p118
      %p120 = scmp.ne.s32.totalorder %s111, %s112
      %p121 = scmp.eq.s32.totalorder %s26, 0
      %p122 = por %p120, %p121
      %p123 = scmp.ne.s32.totalorder %s111, %s112
      %p124 = scmp.eq.s32.totalorder %s27, 3
      %p125 = por %p123, %p124
      %p127 = scmp.ne.s32.totalorder %s112, %s126
      %p128 = scmp.eq.s32.totalorder %s27, 0
      %p129 = por %p127, %p128
      %s131 = sadd.s32 %s130, 1
      %p134 = scmp.eq.s32.totalorder %s21, 3
      %p135 = scmp.ne.s32.totalorder %s130, %s132
      %p136 = scmp.eq.s32.totalorder %s21, 0
      %p137 = por %p135, %p136
      %p138 = scmp.ne.s32.totalorder %s130, %s132
      %p139 = scmp.eq.s32.totalorder %s26, 3
      %p140 = por %p138, %p139
      %p141 = scmp.ne.s32.totalorder %s132, %s133
      %p142 = scmp.eq.s32.totalorder %s26, 0
      %p143 = por %p141, %p142
      %p144 = scmp.ne.s32.totalorder %s132, %s133
      %p145 = scmp.eq.s32.totalorder %s27, 3
      %p146 = por %p144, %p145
      %p148 = scmp.ne.s32.totalorder %s133, %s147
      %p149 = scmp.eq.s32.totalorder %s27, 0
      %p150 = por %p148, %p149
      %s152 = sadd.s32 %s151, 1
      %p155 = scmp.eq.s32.totalorder %s21, 3
      %p156 = scmp.ne.s32.totalorder %s151, %s153
      %p157 = scmp.eq.s32.totalorder %s21, 0
      %p158 = por %p156, %p157
      %p159 = scmp.ne.s32.totalorder %s151, %s153
      %p160 = scmp.eq.s32.totalorder %s26, 3
      %p161 = por %p159, %p160
      %p162 = scmp.ne.s32.totalorder %s153, %s154
      %p163 = scmp.eq.s32.totalorder %s26, 0
      %p164 = por %p162, %p163
      %p165 = scmp.ne.s32.totalorder %s153, %s154
      %p166 = scmp.eq.s32.totalorder %s27, 3
      %p167 = por %p165, %p166
      %p169 = scmp.ne.s32.totalorder %s154, %s168
      %p170 = scmp.eq.s32.totalorder %s27, 0
      %p171 = por %p169, %p170
      %s173 = sadd.s32 %s172, 1
      %p176 = scmp.eq.s32.totalorder %s21, 3
      %p177 = scmp.ne.s32.totalorder %s172, %s174
      %p178 = scmp.eq.s32.totalorder %s21, 0
      %p179 = por %p177, %p178
      %p180 = scmp.ne.s32.totalorder %s172, %s174
      %p181 = scmp.eq.s32.totalorder %s26, 3
      %p182 = por %p180, %p181
      %p183 = scmp.ne.s32.totalorder %s174, %s175
      %p184 = scmp.eq.s32.totalorder %s26, 0
      %p185 = por %p183, %p184
      %p186 = scmp.ne.s32.totalorder %s174, %s175
      %p187 = scmp.eq.s32.totalorder %s27, 3
      %p188 = por %p186, %p187
      %p190 = scmp.ne.s32.totalorder %s175, %s189
      %p191 = scmp.eq.s32.totalorder %s27, 0
      %p192 = por %p190, %p191
      %s193 = ssub.s32 %s28, %s40
      %s194 = ssub.s32 %s29, %s36
      %s195 = sor.u32 %s193, %s194
      %p196 = scmp.eq.s32.totalorder %s195, 0
      %s198 = sadd.s32 %s197, 1
      %s199 = scalar_select %p196, %s197, %s198
      %p202 = pneg %p196
      %p203 = scmp.eq.s32.totalorder %s21, 3
      %p204 = por %p202, %p203
      %p205 = scmp.ne.s32.totalorder %s197, %s200
      %p206 = scmp.eq.s32.totalorder %s21, 0
      %p207 = por %p205, %p206
      %p208 = scmp.ne.s32.totalorder %s197, %s200
      %p209 = scmp.eq.s32.totalorder %s26, 3
      %p210 = por %p208, %p209
      %p211 = scmp.ne.s32.totalorder %s200, %s201
      %p212 = scmp.eq.s32.totalorder %s26, 0
      %p213 = por %p211, %p212
      %p214 = scmp.ne.s32.totalorder %s200, %s201
      %p215 = scmp.eq.s32.totalorder %s27, 3
      %p216 = por %p214, %p215
      %p218 = scmp.ne.s32.totalorder %s201, %s217
      %p219 = scmp.eq.s32.totalorder %s27, 0
      %p220 = por %p218, %p219
      %p221 = scmp.le.s32.totalorder 1, %s21
      %p222 = scmp.lt.s32.totalorder %s21, 5
      %p223 = pnand %p221, %p222
      %p224 = pneg %p223
      // Predicated region
      $region9: #{tpu_custom_call.1} parent=5 // pred_check
        _
      $region10: #{tpu_custom_call.1} parent=5 // pred_check_branch
        %226 = sbr.rel (%p223) target = $region12
      $region11: #{tpu_custom_call.1} parent=5 // pred_region
        %s227 = ssub.s32 %s21, 1
        // Predicated region
        $region13: #{tpu_custom_call.1} parent=11 // pred_check
          %p228 = pneg %p80
        $region14: #{tpu_custom_call.1} parent=11 // pred_check_branch
          %230 = sbr.rel (%p228) target = $region16
        $region15: #{tpu_custom_call.1} parent=11 // pred_region
          %s232 = ssub.s32 1024, 1024
          %233 = vsyncadd [#allocation6], %s232
          %s234 = sshll.u32 [#allocation5], 4
          %s235 = int_to_ptr.vmem [resolvable:$true] %s234
          %240 = dma.hbm_to_vmem [thread:$0]  %s1, 1024, %s235, [#allocation6], 64, 64, 4
        $region16: #{tpu_custom_call.1} parent=11 // pred_fallthru
          _
        // Predicated region
        $region17: #{tpu_custom_call.1} parent=11 // pred_check
          %p241 = pneg %p101
        $region18: #{tpu_custom_call.1} parent=11 // pred_check_branch
          %243 = sbr.rel (%p241) target = $region20
        $region19: #{tpu_custom_call.1} parent=11 // pred_region
          _
        $region20: #{tpu_custom_call.1} parent=11 // pred_fallthru
          _
        // Predicated region
        $region21: #{tpu_custom_call.1} parent=11 // pred_check
          %p244 = pneg %p122
        $region22: #{tpu_custom_call.1} parent=11 // pred_check_branch
          %246 = sbr.rel (%p244) target = $region24
        $region23: #{tpu_custom_call.1} parent=11 // pred_region
          %s248 = ssub.s32 192, 192
          %249 = vsyncadd [#allocation6], %s248
          %s250 = sshll.u32 [#allocation7], 4
          %s251 = int_to_ptr.vmem [resolvable:$true] %s250
          %256 = dma.hbm_to_vmem [thread:$0]  %s3, 192, %s251, [#allocation6], 64, 64, 4
        $region24: #{tpu_custom_call.1} parent=11 // pred_fallthru
          _
        // Predicated region
        $region25: #{tpu_custom_call.1} parent=11 // pred_check
          %p257 = pneg %p143
        $region26: #{tpu_custom_call.1} parent=11 // pred_check_branch
          %259 = sbr.rel (%p257) target = $region28
        $region27: #{tpu_custom_call.1} parent=11 // pred_region
          _
        $region28: #{tpu_custom_call.1} parent=11 // pred_fallthru
          _
        // Predicated region
        $region29: #{tpu_custom_call.1} parent=11 // pred_check
          %p260 = pneg %p164
        $region30: #{tpu_custom_call.1} parent=11 // pred_check_branch
          %262 = sbr.rel (%p260) target = $region32
        $region31: #{tpu_custom_call.1} parent=11 // pred_region
          %s264 = ssub.s32 1024, 1024
          %265 = vsyncadd [#allocation9], %s264
          %s266 = sshll.u32 [#allocation8], 4
          %s267 = int_to_ptr.vmem [resolvable:$true] %s266
          %272 = dma.hbm_to_vmem [thread:$0]  %s5, 1024, %s267, [#allocation9], 64, 64, 4
        $region32: #{tpu_custom_call.1} parent=11 // pred_fallthru
          _
        // Predicated region
        $region33: #{tpu_custom_call.1} parent=11 // pred_check
          %p273 = pneg %p185
        $region34: #{tpu_custom_call.1} parent=11 // pred_check_branch
          %275 = sbr.rel (%p273) target = $region36
        $region35: #{tpu_custom_call.1} parent=11 // pred_region
          _
        $region36: #{tpu_custom_call.1} parent=11 // pred_fallthru
          _
      $region12: #{tpu_custom_call.1} parent=5 // pred_fallthru
        _
      %p276 = scmp.lt.s32.totalorder %s21, 4
      // Predicated region
      $region37: #{tpu_custom_call.1} parent=5 // pred_check
        %p277 = pneg %p276
      $region38: #{tpu_custom_call.1} parent=5 // pred_check_branch
        %279 = sbr.rel (%p277) target = $region40
      $region39: #{tpu_custom_call.1} parent=5 // pred_region
        // Predicated region
        $region41: #{tpu_custom_call.1} parent=39 // pred_check
          %p280 = pneg %p53
        $region42: #{tpu_custom_call.1} parent=39 // pred_check_branch
          %282 = sbr.rel (%p280) target = $region44
        $region43: #{tpu_custom_call.1} parent=39 // pred_region
          %s283 = sand.u32 %s43, 1
          %s284 = scalar_lea.sflag [#allocation3], %s283
          %s285 = sand.u32 %s43, 1
          %s286 = smul.addr %s285, 432
          %s287 = scalar_lea.vmem [#allocation2], %s286
          %s289 = ssub.s32 6912, 6912
          %290 = vsyncadd %s284, %s289
          %s291 = smul.addr %s28, 54
          %s292 = smul.addr %s291, 128
          %s293 = scalar_lea.hbm %s0, %s292
          %s294 = sshll.u32 %s287, 4
          %s295 = int_to_ptr.vmem [resolvable:$true] %s294
          %300 = dma.hbm_to_vmem [thread:$0]  %s293, 6912, %s295, %s284, 128, 128, 8
        $region44: #{tpu_custom_call.1} parent=39 // pred_fallthru
          _
      $region40: #{tpu_custom_call.1} parent=5 // pred_fallthru
        _
      %p301 = scmp.le.s32.totalorder 1, %s21
      %p302 = scmp.lt.s32.totalorder %s21, 5
      %p303 = pnand %p301, %p302
      %p304 = pneg %p303
      // Predicated region
      $region45: #{tpu_custom_call.1} parent=5 // pred_check
        _
      $region46: #{tpu_custom_call.1} parent=5 // pred_check_branch
        %306 = sbr.rel (%p303) target = $region48
      $region47: #{tpu_custom_call.1} parent=5 // pred_region
        %s307 = ssub.s32 %s21, 1
        %s308 = sand.u32 %s46, 1
        %s309 = scalar_lea.sflag [#allocation3], %s308
        %s310 = sand.u32 %s46, 1
        %s311 = smul.addr %s310, 432
        %s312 = scalar_lea.vmem [#allocation2], %s311
        // Predicated region
        $region49: #{tpu_custom_call.1} parent=47 // pred_check
          %p313 = pneg %p59
        $region50: #{tpu_custom_call.1} parent=47 // pred_check_branch
          %315 = sbr.rel (%p313) target = $region52
        $region51: #{tpu_custom_call.1} parent=47 // pred_region
          %316 = dma.done %s309, 6912
        $region52: #{tpu_custom_call.1} parent=47 // pred_fallthru
          _
        // Predicated region
        $region53: #{tpu_custom_call.1} parent=47 // pred_check
          %p317 = pneg %p80
        $region54: #{tpu_custom_call.1} parent=47 // pred_check_branch
          %319 = sbr.rel (%p317) target = $region56
        $region55: #{tpu_custom_call.1} parent=47 // pred_region
          %320 = dma.done [#allocation6], 1024
        $region56: #{tpu_custom_call.1} parent=47 // pred_fallthru
          _
        // Predicated region
        $region57: #{tpu_custom_call.1} parent=47 // pred_check
          %p321 = pneg %p122
        $region58: #{tpu_custom_call.1} parent=47 // pred_check_branch
          %323 = sbr.rel (%p321) target = $region60
        $region59: #{tpu_custom_call.1} parent=47 // pred_region
          %324 = dma.done [#allocation6], 192
        $region60: #{tpu_custom_call.1} parent=47 // pred_fallthru
          _
        // Predicated region
        $region61: #{tpu_custom_call.1} parent=47 // pred_check
          %p325 = pneg %p164
        $region62: #{tpu_custom_call.1} parent=47 // pred_check_branch
          %327 = sbr.rel (%p325) target = $region64
        $region63: #{tpu_custom_call.1} parent=47 // pred_region
          %328 = dma.done [#allocation9], 1024
        $region64: #{tpu_custom_call.1} parent=47 // pred_fallthru
          _
        %s329 = sand.u32 %s46, 1
        %s330 = scalar_lea.sflag [#allocation3], %s329
        %s331 = sand.u32 %s46, 1
        %s332 = smul.addr %s331, 432
        %s333 = scalar_lea.vmem [#allocation2], %s332
        %p334 = pneg %p59
        %p335 = pneg %p56
        %p336 = pneg %p80
        %p337 = pneg %p77
        %p338 = pneg %p101
        %p339 = pneg %p98
        %p340 = pneg %p122
        %p341 = pneg %p119
        %p342 = pneg %p143
        %p343 = pneg %p140
        %p344 = pneg %p164
        %p345 = pneg %p161
        %p346 = pneg %p185
        %p347 = pneg %p182
        %p348 = pneg %p213
        %p349 = pneg %p210
        %s350 = sand.u32 %s200, 1
        %s351 = scalar_lea.sflag [#allocation4], %s350
        %s352 = sand.u32 %s200, 1
        %s353 = smul.addr %s352, 128
        %s354 = scalar_lea.vmem [#allocation10], %s353
        %s355 = smul.u32 8, %s31
        %s357 = smul.u32 %s31, 8
        %s358 = smul.u32 %s357, 24
        %s359 = scalar_lea.vmem %s312, %s358 [#allocation2]
        %v360 = vld [vmem:[%s359] sm:$0xff]
        %v361 = vld [vmem:[%s359 + $0x8] sm:$0xff]
        %v362 = vld [vmem:[%s359 + $0x10] sm:$0xff]
        %v363 = vld [vmem:[%s359 + $0x18] sm:$0xff]
        %v364 = vld [vmem:[%s359 + $0x20] sm:$0xff]
        %v365 = vld [vmem:[%s359 + $0x28] sm:$0xff]
        %v366 = vld [vmem:[%s359 + $0x30] sm:$0xff]
        %v367 = vld [vmem:[%s359 + $0x38] sm:$0xff]
        %v368 = vld [vmem:[%s359 + $0x40] sm:$0xff]
        %v369 = vld [vmem:[%s359 + $0x48] sm:$0xff]
        %v370 = vld [vmem:[%s359 + $0x50] sm:$0xff]
        %v371 = vld [vmem:[%s359 + $0x58] sm:$0xff]
        %v372 = vld [vmem:[%s359 + $0x60] sm:$0xff]
        %v373 = vld [vmem:[%s359 + $0x68] sm:$0xff]
        %v374 = vld [vmem:[%s359 + $0x70] sm:$0xff]
        %v375 = vld [vmem:[%s359 + $0x78] sm:$0xff]
        %v376 = vld [vmem:[%s359 + $0x80] sm:$0xff]
        %v377 = vld [vmem:[%s359 + $0x88] sm:$0xff]
        %v378 = vld [vmem:[%s359 + $0x90] sm:$0xff]
        %v379 = vld [vmem:[%s359 + $0x98] sm:$0xff]
        %v380 = vld [vmem:[%s359 + $0xa0] sm:$0xff]
        %v381 = vld [vmem:[%s359 + $0xa8] sm:$0xff]
        %v382 = vld [vmem:[%s359 + $0xb0] sm:$0xff]
        %v383 = vld [vmem:[%s359 + $0xb8] sm:$0xff]
        %v384 = vld [vmem:[%s359 + $0xc0] sm:$0xff]
        %v385 = vld [vmem:[%s359 + $0xc8] sm:$0xff]
        %v386 = vld [vmem:[%s359 + $0xd0] sm:$0xff]
        %v387 = vld [vmem:[%s359 + $0xd8] sm:$0xff]
        %v388 = vld [vmem:[%s359 + $0xe0] sm:$0xff]
        %v389 = vld [vmem:[%s359 + $0xe8] sm:$0xff]
        %v390 = vpack.c.bf16 %v361, %v360
        %v391 = vpack.c.bf16 %v363, %v362
        %v392 = vpack.c.bf16 %v365, %v364
        %v393 = vpack.c.bf16 %v367, %v366
        %v394 = vpack.c.bf16 %v369, %v368
        %v395 = vpack.c.bf16 %v371, %v370
        %v396 = vpack.c.bf16 %v373, %v372
        %v397 = vpack.c.bf16 %v375, %v374
        %v398 = vpack.c.bf16 %v377, %v376
        %v399 = vpack.c.bf16 %v379, %v378
        %v400 = vpack.c.bf16 %v381, %v380
        %v401 = vpack.c.bf16 %v383, %v382
        %v402 = vpack.c.bf16 %v385, %v384
        %v403 = vpack.c.bf16 %v387, %v386
        %v404 = vpack.c.bf16 %v389, %v388
        %v405 = vld [vmem:[#allocation5] sm:$0xf]
        %v406 = vld [vmem:[#allocation5 + $0x4] sm:$0xf]
        %v407 = vld [vmem:[#allocation5 + $0x8] sm:$0xf]
        %v408 = vld [vmem:[#allocation5 + $0xc] sm:$0xf]
        %v409 = vld [vmem:[#allocation5 + $0x10] sm:$0xf]
        %v410 = vld [vmem:[#allocation5 + $0x14] sm:$0xf]
        %v411 = vld [vmem:[#allocation5 + $0x18] sm:$0xf]
        %v412 = vld [vmem:[#allocation5 + $0x1c] sm:$0xf]
        %v413 = vld [vmem:[#allocation5 + $0x20] sm:$0xf]
        %v414 = vld [vmem:[#allocation5 + $0x24] sm:$0xf]
        %v415 = vld [vmem:[#allocation5 + $0x28] sm:$0xf]
        %v416 = vld [vmem:[#allocation5 + $0x2c] sm:$0xf]
        %v417 = vld [vmem:[#allocation5 + $0x30] sm:$0xf]
        %v418 = vld [vmem:[#allocation5 + $0x34] sm:$0xf]
        %v419 = vld [vmem:[#allocation5 + $0x38] sm:$0xf]
        %v420 = vld [vmem:[#allocation5 + $0x3c] sm:$0xf]
        %v421 = vld [vmem:[%s2] sm:$0x1]
        %v423 = vlaneseq
        %v424 = vshrl.u32 %v423, 7
        %v425 = vsub.s32 0, %v424
        %v426 = vrot.slane %v421, %v425
        %v444 = vunpack.c.l.b16 %v405
        %v445 = vunpack.c.l.b16 %v406
        %v446 = vunpack.c.l.b16 %v407
        %v447 = vunpack.c.l.b16 %v408
        %v448 = vunpack.c.l.b16 %v409
        %v449 = vunpack.c.l.b16 %v410
        %v450 = vunpack.c.l.b16 %v411
        %v451 = vunpack.c.l.b16 %v412
        %v452 = vunpack.c.l.b16 %v413
        %v453 = vunpack.c.l.b16 %v414
        %v454 = vunpack.c.l.b16 %v415
        %v455 = vunpack.c.l.b16 %v416
        %v456 = vunpack.c.l.b16 %v417
        %v457 = vunpack.c.l.b16 %v418
        %v458 = vunpack.c.l.b16 %v419
        %v459 = vunpack.c.l.b16 %v420
        %v460 = vpack.c.b16 %v445, %v444
        %v461 = vpack.c.b16 %v447, %v446
        %v462 = vpack.c.b16 %v449, %v448
        %v463 = vpack.c.b16 %v451, %v450
        %v464 = vpack.c.b16 %v453, %v452
        %v465 = vpack.c.b16 %v455, %v454
        %v466 = vpack.c.b16 %v457, %v456
        %v467 = vpack.c.b16 %v459, %v458
        %476 = vmatprep.subr.bf16.mxu0 0
        %477 = vmatpush1.bf16.msra.mxu0 %v460
        %478 = vmatprep.subr.bf16.mxu0 0
        %479 = vmatpush1.bf16.msra.mxu0 %v461
        %480 = vmatprep.subr.bf16.mxu0 0
        %481 = vmatpush1.bf16.msra.mxu0 %v462
        %482 = vmatprep.subr.bf16.mxu0 0
        %483 = vmatpush1.bf16.msra.mxu0 %v463
        %484 = vmatprep.subr.bf16.mxu0 0
        %485 = vmatpush1.bf16.msra.mxu0 %v464
        %486 = vmatprep.subr.bf16.mxu0 0
        %487 = vmatpush1.bf16.msra.mxu0 %v465
        %488 = vmatprep.subr.bf16.mxu0 0
        %489 = vmatpush1.bf16.msra.mxu0 %v466
        %490 = vmatprep.subr.bf16.mxu0 0
        %491 = vmatpush1.bf16.msra.mxu0 %v467
        %492 = vmatprep.subr.bf16.mxu0 0
        %493 = vmatpush1.bf16.msra.mxu0 0
        %494 = vmatprep.subr.bf16.mxu0 0
        %495 = vmatpush1.bf16.msra.mxu0 0
        %496 = vmatprep.subr.bf16.mxu0 0
        %497 = vmatpush1.bf16.msra.mxu0 0
        %498 = vmatprep.subr.bf16.mxu0 0
        %499 = vmatpush1.bf16.msra.mxu0 0
        %500 = vmatprep.subr.bf16.mxu0 0
        %501 = vmatpush1.bf16.msra.mxu0 0
        %502 = vmatprep.subr.bf16.mxu0 0
        %503 = vmatpush1.bf16.msra.mxu0 0
        %504 = vmatprep.subr.bf16.mxu0 0
        %505 = vmatpush1.bf16.msra.mxu0 0
        %506 = vmatprep.subr.bf16.mxu0 0
        %507 = vmatpush1.bf16.msra.mxu0 0
        %508 = vmatprep.mubr.bf16.mxu0 0
        %509 = vmatmul.mubr.bf16.gmra.mrb[0].mxu0 %v390
        %v510 = vpop.f32.mrb[0].mxu0
        %v511 = vadd.f32 %v426, %v510
        %v512 = vpop.f32.mrb[0].mxu0
        %v513 = vpop.f32.mrb[0].mxu0
        %v514 = vadd.f32 %v426, %v513
        %v515 = vpop.f32.mrb[0].mxu0
        %516 = vmatprep.mubr.bf16.mxu0 0
        %517 = vmatmul.mubr.bf16.gmra.mrb[0].mxu0 %v391
        %v518 = vpop.f32.mrb[0].mxu0
        %v519 = vadd.f32 %v426, %v518
        %v520 = vpop.f32.mrb[0].mxu0
        %v521 = vpop.f32.mrb[0].mxu0
        %v522 = vadd.f32 %v426, %v521
        %v523 = vpop.f32.mrb[0].mxu0
        %524 = vmatprep.mubr.bf16.mxu0 0
        %525 = vmatmul.mubr.bf16.gmra.mrb[0].mxu0 %v392
        %v526 = vpop.f32.mrb[0].mxu0
        %v527 = vadd.f32 %v426, %v526
        %v528 = vpop.f32.mrb[0].mxu0
        %v529 = vpop.f32.mrb[0].mxu0
        %v530 = vadd.f32 %v426, %v529
        %v531 = vpop.f32.mrb[0].mxu0
        %532 = vmatprep.mubr.bf16.mxu0 0
        %533 = vmatmul.mubr.bf16.gmra.mrb[0].mxu0 %v393
        %v534 = vpop.f32.mrb[0].mxu0
        %v535 = vadd.f32 %v426, %v534
        %v536 = vpop.f32.mrb[0].mxu0
        %v537 = vpop.f32.mrb[0].mxu0
        %v538 = vadd.f32 %v426, %v537
        %v539 = vpop.f32.mrb[0].mxu0
        %540 = vmatprep.mubr.bf16.mxu0 0
        %541 = vmatmul.mubr.bf16.gmra.mrb[0].mxu0 %v394
        %v542 = vpop.f32.mrb[0].mxu0
        %v543 = vadd.f32 %v426, %v542
        %v544 = vpop.f32.mrb[0].mxu0
        %v545 = vpop.f32.mrb[0].mxu0
        %v546 = vadd.f32 %v426, %v545
        %v547 = vpop.f32.mrb[0].mxu0
        %548 = vmatprep.mubr.bf16.mxu0 0
        %549 = vmatmul.mubr.bf16.gmra.mrb[0].mxu0 %v395
        %v550 = vpop.f32.mrb[0].mxu0
        %v551 = vadd.f32 %v426, %v550
        %v552 = vpop.f32.mrb[0].mxu0
        %v553 = vpop.f32.mrb[0].mxu0
        %v554 = vadd.f32 %v426, %v553
        %v555 = vpop.f32.mrb[0].mxu0
        %556 = vmatprep.mubr.bf16.mxu0 0
        %557 = vmatmul.mubr.bf16.gmra.mrb[0].mxu0 %v396
        %v558 = vpop.f32.mrb[0].mxu0
        %v559 = vadd.f32 %v426, %v558
        %v560 = vpop.f32.mrb[0].mxu0
        %v561 = vpop.f32.mrb[0].mxu0
        %v562 = vadd.f32 %v426, %v561
        %v563 = vpop.f32.mrb[0].mxu0
        %564 = vmatprep.mubr.bf16.mxu0 0
        %565 = vmatmul.mubr.bf16.gmra.mrb[0].mxu0 %v397
        %v566 = vpop.f32.mrb[0].mxu0
        %v567 = vadd.f32 %v426, %v566
        %v568 = vpop.f32.mrb[0].mxu0
        %v569 = vpop.f32.mrb[0].mxu0
        %v570 = vadd.f32 %v426, %v569
        %v571 = vpop.f32.mrb[0].mxu0
        %572 = vmatprep.mubr.bf16.mxu0 0
        %573 = vmatmul.mubr.bf16.gmra.mrb[0].mxu0 %v398
        %v574 = vpop.f32.mrb[0].mxu0
        %v575 = vadd.f32 %v426, %v574
        %v576 = vpop.f32.mrb[0].mxu0
        %v577 = vpop.f32.mrb[0].mxu0
        %v578 = vadd.f32 %v426, %v577
        %v579 = vpop.f32.mrb[0].mxu0
        %580 = vmatprep.mubr.bf16.mxu0 0
        %581 = vmatmul.mubr.bf16.gmra.mrb[0].mxu0 %v399
        %v582 = vpop.f32.mrb[0].mxu0
        %v583 = vadd.f32 %v426, %v582
        %v584 = vpop.f32.mrb[0].mxu0
        %v585 = vpop.f32.mrb[0].mxu0
        %v586 = vadd.f32 %v426, %v585
        %v587 = vpop.f32.mrb[0].mxu0
        %588 = vmatprep.mubr.bf16.mxu0 0
        %589 = vmatmul.mubr.bf16.gmra.mrb[0].mxu0 %v400
        %v590 = vpop.f32.mrb[0].mxu0
        %v591 = vadd.f32 %v426, %v590
        %v592 = vpop.f32.mrb[0].mxu0
        %v593 = vpop.f32.mrb[0].mxu0
        %v594 = vadd.f32 %v426, %v593
        %v595 = vpop.f32.mrb[0].mxu0
        %596 = vmatprep.mubr.bf16.mxu0 0
        %597 = vmatmul.mubr.bf16.gmra.mrb[0].mxu0 %v401
        %v598 = vpop.f32.mrb[0].mxu0
        %v599 = vadd.f32 %v426, %v598
        %v600 = vpop.f32.mrb[0].mxu0
        %v601 = vpop.f32.mrb[0].mxu0
        %v602 = vadd.f32 %v426, %v601
        %v603 = vpop.f32.mrb[0].mxu0
        %604 = vmatprep.mubr.bf16.mxu0 0
        %605 = vmatmul.mubr.bf16.gmra.mrb[0].mxu0 %v402
        %v606 = vpop.f32.mrb[0].mxu0
        %v607 = vadd.f32 %v426, %v606
        %v608 = vpop.f32.mrb[0].mxu0
        %v609 = vpop.f32.mrb[0].mxu0
        %v610 = vadd.f32 %v426, %v609
        %v611 = vpop.f32.mrb[0].mxu0
        %612 = vmatprep.mubr.bf16.mxu0 0
        %613 = vmatmul.mubr.bf16.gmra.mrb[0].mxu0 %v403
        %v614 = vpop.f32.mrb[0].mxu0
        %v615 = vadd.f32 %v426, %v614
        %v616 = vpop.f32.mrb[0].mxu0
        %v617 = vpop.f32.mrb[0].mxu0
        %v618 = vadd.f32 %v426, %v617
        %v619 = vpop.f32.mrb[0].mxu0
        %620 = vmatprep.mubr.bf16.mxu0 0
        %621 = vmatmul.mubr.bf16.gmra.mrb[0].mxu0 %v404
        %v622 = vpop.f32.mrb[0].mxu0
        %v623 = vadd.f32 %v426, %v622
        %v624 = vpop.f32.mrb[0].mxu0
        %v625 = vpop.f32.mrb[0].mxu0
        %v626 = vadd.f32 %v426, %v625
        %v627 = vpop.f32.mrb[0].mxu0
        %628 = vdwg.mxu0
        %v629 = vmax.f32 %v511, 0.0
        %v630 = vmax.f32 %v514, 0.0
        %v631 = vmax.f32 %v519, 0.0
        %v632 = vmax.f32 %v522, 0.0
        %v633 = vmax.f32 %v527, 0.0
        %v634 = vmax.f32 %v530, 0.0
        %v635 = vmax.f32 %v535, 0.0
        %v636 = vmax.f32 %v538, 0.0
        %v637 = vmax.f32 %v543, 0.0
        %v638 = vmax.f32 %v546, 0.0
        %v639 = vmax.f32 %v551, 0.0
        %v640 = vmax.f32 %v554, 0.0
        %v641 = vmax.f32 %v559, 0.0
        %v642 = vmax.f32 %v562, 0.0
        %v643 = vmax.f32 %v567, 0.0
        %v644 = vmax.f32 %v570, 0.0
        %v645 = vmax.f32 %v575, 0.0
        %v646 = vmax.f32 %v578, 0.0
        %v647 = vmax.f32 %v583, 0.0
        %v648 = vmax.f32 %v586, 0.0
        %v649 = vmax.f32 %v591, 0.0
        %v650 = vmax.f32 %v594, 0.0
        %v651 = vmax.f32 %v599, 0.0
        %v652 = vmax.f32 %v602, 0.0
        %v653 = vmax.f32 %v607, 0.0
        %v654 = vmax.f32 %v610, 0.0
        %v655 = vmax.f32 %v615, 0.0
        %v656 = vmax.f32 %v618, 0.0
        %v657 = vmax.f32 %v623, 0.0
        %v658 = vmax.f32 %v626, 0.0
        %v659 = vstv %s357
        %v660 = vadd.s32 %v659, 1
        %v661 = vadd.s32 %v659, 2
        %v662 = vadd.s32 %v659, 3
        %v663 = vadd.s32 %v659, 4
        %v664 = vadd.s32 %v659, 5
        %v665 = vadd.s32 %v659, 6
        %v666 = vadd.s32 %v659, 7
        %v667 = vadd.s32 %v659, 8
        %v668 = vadd.s32 %v659, 9
        %v669 = vlaneseq
        %v670 = vshrl.u32 %v669, 7
        %v671 = vadd.s32 %v670, 8
        %v672 = vadd.s32 %v670, 16
        %vm673 = vcmp.ge.s32.totalorder %v659, 1
        %vm674 = vcmp.ge.s32.totalorder %v660, 1
        %vm675 = vcmp.ge.s32.totalorder %v661, 1
        %vm676 = vcmp.ge.s32.totalorder %v662, 1
        %vm677 = vcmp.ge.s32.totalorder %v663, 1
        %vm678 = vcmp.ge.s32.totalorder %v664, 1
        %vm679 = vcmp.ge.s32.totalorder %v665, 1
        %vm680 = vcmp.ge.s32.totalorder %v666, 1
        %vm681 = vcmp.ge.s32.totalorder %v667, 1
        %vm682 = vcmp.ge.s32.totalorder %v668, 1
        %vm683 = vcmp.le.s32.totalorder %v659, 16
        %vm684 = vcmp.le.s32.totalorder %v660, 16
        %vm685 = vcmp.le.s32.totalorder %v661, 16
        %vm686 = vcmp.le.s32.totalorder %v662, 16
        %vm687 = vcmp.le.s32.totalorder %v663, 16
        %vm688 = vcmp.le.s32.totalorder %v664, 16
        %vm689 = vcmp.le.s32.totalorder %v665, 16
        %vm690 = vcmp.le.s32.totalorder %v666, 16
        %vm691 = vcmp.le.s32.totalorder %v667, 16
        %vm692 = vcmp.le.s32.totalorder %v668, 16
        %vm693 = vmand %vm673, %vm683
        %vm694 = vmand %vm674, %vm684
        %vm695 = vmand %vm675, %vm685
        %vm696 = vmand %vm676, %vm686
        %vm697 = vmand %vm677, %vm687
        %vm698 = vmand %vm678, %vm688
        %vm699 = vmand %vm679, %vm689
        %vm700 = vmand %vm680, %vm690
        %vm701 = vmand %vm681, %vm691
        %vm702 = vmand %vm682, %vm692
        %vm703 = vcmp.ge.s32.totalorder %v670, 1
        %vm704 = vcmp.ge.s32.totalorder %v671, 1
        %vm705 = vcmp.ge.s32.totalorder %v672, 1
        %vm706 = vmand %vm693, %vm703
        %vm707 = vmand %vm693, %vm704
        %vm708 = vmand %vm693, %vm705
        %vm709 = vmand %vm694, %vm703
        %vm710 = vmand %vm694, %vm704
        %vm711 = vmand %vm694, %vm705
        %vm712 = vmand %vm695, %vm703
        %vm713 = vmand %vm695, %vm704
        %vm714 = vmand %vm695, %vm705
        %vm715 = vmand %vm696, %vm703
        %vm716 = vmand %vm696, %vm704
        %vm717 = vmand %vm696, %vm705
        %vm718 = vmand %vm697, %vm703
        %vm719 = vmand %vm697, %vm704
        %vm720 = vmand %vm697, %vm705
        %vm721 = vmand %vm698, %vm703
        %vm722 = vmand %vm698, %vm704
        %vm723 = vmand %vm698, %vm705
        %vm724 = vmand %vm699, %vm703
        %vm725 = vmand %vm699, %vm704
        %vm726 = vmand %vm699, %vm705
        %vm727 = vmand %vm700, %vm703
        %vm728 = vmand %vm700, %vm704
        %vm729 = vmand %vm700, %vm705
        %vm730 = vmand %vm701, %vm703
        %vm731 = vmand %vm701, %vm704
        %vm732 = vmand %vm701, %vm705
        %vm733 = vmand %vm702, %vm703
        %vm734 = vmand %vm702, %vm704
        %vm735 = vmand %vm702, %vm705
        %vm736 = vcmp.le.s32.totalorder %v670, 16
        %vm737 = vcmp.le.s32.totalorder %v671, 16
        %vm738 = vcmp.le.s32.totalorder %v672, 16
        %vm739 = vmand %vm706, %vm736
        %vm740 = vmand %vm707, %vm737
        %vm741 = vmand %vm708, %vm738
        %vm742 = vmand %vm709, %vm736
        %vm743 = vmand %vm710, %vm737
        %vm744 = vmand %vm711, %vm738
        %vm745 = vmand %vm712, %vm736
        %vm746 = vmand %vm713, %vm737
        %vm747 = vmand %vm714, %vm738
        %vm748 = vmand %vm715, %vm736
        %vm749 = vmand %vm716, %vm737
        %vm750 = vmand %vm717, %vm738
        %vm751 = vmand %vm718, %vm736
        %vm752 = vmand %vm719, %vm737
        %vm753 = vmand %vm720, %vm738
        %vm754 = vmand %vm721, %vm736
        %vm755 = vmand %vm722, %vm737
        %vm756 = vmand %vm723, %vm738
        %vm757 = vmand %vm724, %vm736
        %vm758 = vmand %vm725, %vm737
        %vm759 = vmand %vm726, %vm738
        %vm760 = vmand %vm727, %vm736
        %vm761 = vmand %vm728, %vm737
        %vm762 = vmand %vm729, %vm738
        %vm763 = vmand %vm730, %vm736
        %vm764 = vmand %vm731, %vm737
        %vm765 = vmand %vm732, %vm738
        %vm766 = vmand %vm733, %vm736
        %vm767 = vmand %vm734, %vm737
        %vm768 = vmand %vm735, %vm738
        %v769 = vsel %vm739, %v629, 0.0
        %v770 = vsel %vm740, %v630, 0.0
        %v771 = vsel %vm741, %v631, 0.0
        %v772 = vsel %vm742, %v632, 0.0
        %v773 = vsel %vm743, %v633, 0.0
        %v774 = vsel %vm744, %v634, 0.0
        %v775 = vsel %vm745, %v635, 0.0
        %v776 = vsel %vm746, %v636, 0.0
        %v777 = vsel %vm747, %v637, 0.0
        %v778 = vsel %vm748, %v638, 0.0
        %v779 = vsel %vm749, %v639, 0.0
        %v780 = vsel %vm750, %v640, 0.0
        %v781 = vsel %vm751, %v641, 0.0
        %v782 = vsel %vm752, %v642, 0.0
        %v783 = vsel %vm753, %v643, 0.0
        %v784 = vsel %vm754, %v644, 0.0
        %v785 = vsel %vm755, %v645, 0.0
        %v786 = vsel %vm756, %v646, 0.0
        %v787 = vsel %vm757, %v647, 0.0
        %v788 = vsel %vm758, %v648, 0.0
        %v789 = vsel %vm759, %v649, 0.0
        %v790 = vsel %vm760, %v650, 0.0
        %v791 = vsel %vm761, %v651, 0.0
        %v792 = vsel %vm762, %v652, 0.0
        %v793 = vsel %vm763, %v653, 0.0
        %v794 = vsel %vm764, %v654, 0.0
        %v795 = vsel %vm765, %v655, 0.0
        %v796 = vsel %vm766, %v656, 0.0
        %v797 = vsel %vm767, %v657, 0.0
        %v798 = vsel %vm768, %v658, 0.0
        %v799 = vld [vmem:[#allocation7] sm:$0x1]
        %v800 = vlaneseq
        %v801 = vshrl.u32 %v800, 7
        %v802 = vsub.s32 0, %v801
        %v803 = vrot.slane %v799, %v802
        %v804 = vmul.f32 %v769, %v803
        %v805 = vmul.f32 %v770, %v803
        %v806 = vmul.f32 %v772, %v803
        %v807 = vmul.f32 %v773, %v803
        %v808 = vmul.f32 %v775, %v803
        %v809 = vmul.f32 %v776, %v803
        %v810 = vmul.f32 %v778, %v803
        %v811 = vmul.f32 %v779, %v803
        %v812 = vmul.f32 %v781, %v803
        %v813 = vmul.f32 %v782, %v803
        %v814 = vmul.f32 %v784, %v803
        %v815 = vmul.f32 %v785, %v803
        %v816 = vmul.f32 %v787, %v803
        %v817 = vmul.f32 %v788, %v803
        %v818 = vmul.f32 %v790, %v803
        %v819 = vmul.f32 %v791, %v803
        %s820 = scalar_lea.vmem [#allocation7], 4
        %v821 = vld [vmem:[%s820] sm:$0x1]
        %v822 = vlaneseq
        %v823 = vshrl.u32 %v822, 7
        %v824 = vsub.s32 0, %v823
        %v825 = vrot.slane %v821, %v824
        %v826 = vmul.f32 %v772, %v825
        %v827 = vmul.f32 %v773, %v825
        %v828 = vmul.f32 %v775, %v825
        %v829 = vmul.f32 %v776, %v825
        %v830 = vmul.f32 %v778, %v825
        %v831 = vmul.f32 %v779, %v825
        %v832 = vmul.f32 %v781, %v825
        %v833 = vmul.f32 %v782, %v825
        %v834 = vmul.f32 %v784, %v825
        %v835 = vmul.f32 %v785, %v825
        %v836 = vmul.f32 %v787, %v825
        %v837 = vmul.f32 %v788, %v825
        %v838 = vmul.f32 %v790, %v825
        %v839 = vmul.f32 %v791, %v825
        %v840 = vmul.f32 %v793, %v825
        %v841 = vmul.f32 %v794, %v825
        %v842 = vadd.f32 %v804, %v826
        %v843 = vadd.f32 %v805, %v827
        %v844 = vadd.f32 %v806, %v828
        %v845 = vadd.f32 %v807, %v829
        %v846 = vadd.f32 %v808, %v830
        %v847 = vadd.f32 %v809, %v831
        %v848 = vadd.f32 %v810, %v832
        %v849 = vadd.f32 %v811, %v833
        %v850 = vadd.f32 %v812, %v834
        %v851 = vadd.f32 %v813, %v835
        %v852 = vadd.f32 %v814, %v836
        %v853 = vadd.f32 %v815, %v837
        %v854 = vadd.f32 %v816, %v838
        %v855 = vadd.f32 %v817, %v839
        %v856 = vadd.f32 %v818, %v840
        %v857 = vadd.f32 %v819, %v841
        %s858 = scalar_lea.vmem [#allocation7], 8
        %v859 = vld [vmem:[%s858] sm:$0x1]
        %v860 = vlaneseq
        %v861 = vshrl.u32 %v860, 7
        %v862 = vsub.s32 0, %v861
        %v863 = vrot.slane %v859, %v862
        %v864 = vmul.f32 %v775, %v863
        %v865 = vmul.f32 %v776, %v863
        %v866 = vmul.f32 %v778, %v863
        %v867 = vmul.f32 %v779, %v863
        %v868 = vmul.f32 %v781, %v863
        %v869 = vmul.f32 %v782, %v863
        %v870 = vmul.f32 %v784, %v863
        %v871 = vmul.f32 %v785, %v863
        %v872 = vmul.f32 %v787, %v863
        %v873 = vmul.f32 %v788, %v863
        %v874 = vmul.f32 %v790, %v863
        %v875 = vmul.f32 %v791, %v863
        %v876 = vmul.f32 %v793, %v863
        %v877 = vmul.f32 %v794, %v863
        %v878 = vmul.f32 %v796, %v863
        %v879 = vmul.f32 %v797, %v863
        %v880 = vadd.f32 %v842, %v864
        %v881 = vadd.f32 %v843, %v865
        %v882 = vadd.f32 %v844, %v866
        %v883 = vadd.f32 %v845, %v867
        %v884 = vadd.f32 %v846, %v868
        %v885 = vadd.f32 %v847, %v869
        %v886 = vadd.f32 %v848, %v870
        %v887 = vadd.f32 %v849, %v871
        %v888 = vadd.f32 %v850, %v872
        %v889 = vadd.f32 %v851, %v873
        %v890 = vadd.f32 %v852, %v874
        %v891 = vadd.f32 %v853, %v875
        %v892 = vadd.f32 %v854, %v876
        %v893 = vadd.f32 %v855, %v877
        %v894 = vadd.f32 %v856, %v878
        %v895 = vadd.f32 %v857, %v879
        %v896 = vld [vmem:[#allocation7 + $0x1] sm:$0x1]
        %v897 = vlaneseq
        %v898 = vshrl.u32 %v897, 7
        %v899 = vsub.s32 0, %v898
        %v900 = vrot.slane %v896, %v899
        %v901 = vmul.f32 %v769, %v900
        %v902 = vmul.f32 %v770, %v900
        %v903 = vmul.f32 %v771, %v900
        %v904 = vmul.f32 %v772, %v900
        %v905 = vmul.f32 %v773, %v900
        %v906 = vmul.f32 %v774, %v900
        %v907 = vmul.f32 %v775, %v900
        %v908 = vmul.f32 %v776, %v900
        %v909 = vmul.f32 %v777, %v900
        %v910 = vmul.f32 %v778, %v900
        %v911 = vmul.f32 %v779, %v900
        %v912 = vmul.f32 %v780, %v900
        %v913 = vmul.f32 %v781, %v900
        %v914 = vmul.f32 %v782, %v900
        %v915 = vmul.f32 %v783, %v900
        %v916 = vmul.f32 %v784, %v900
        %v917 = vmul.f32 %v785, %v900
        %v918 = vmul.f32 %v786, %v900
        %v919 = vmul.f32 %v787, %v900
        %v920 = vmul.f32 %v788, %v900
        %v921 = vmul.f32 %v789, %v900
        %v922 = vmul.f32 %v790, %v900
        %v923 = vmul.f32 %v791, %v900
        %v924 = vmul.f32 %v792, %v900
        %vm949 = vcmask 1046528
        %v950 = vrot.slane %v901, 1
        %v951 = vrot.slane %v902, 1
        %v952 = vsel %vm949, %v950, %v951
        %v953 = vrot.slane %v903, 1
        %v954 = vsel %vm949, %v951, %v953
        %v955 = vrot.slane %v904, 1
        %v956 = vrot.slane %v905, 1
        %v957 = vsel %vm949, %v955, %v956
        %v958 = vrot.slane %v906, 1
        %v959 = vsel %vm949, %v956, %v958
        %v960 = vrot.slane %v907, 1
        %v961 = vrot.slane %v908, 1
        %v962 = vsel %vm949, %v960, %v961
        %v963 = vrot.slane %v909, 1
        %v964 = vsel %vm949, %v961, %v963
        %v965 = vrot.slane %v910, 1
        %v966 = vrot.slane %v911, 1
        %v967 = vsel %vm949, %v965, %v966
        %v968 = vrot.slane %v912, 1
        %v969 = vsel %vm949, %v966, %v968
        %v970 = vrot.slane %v913, 1
        %v971 = vrot.slane %v914, 1
        %v972 = vsel %vm949, %v970, %v971
        %v973 = vrot.slane %v915, 1
        %v974 = vsel %vm949, %v971, %v973
        %v975 = vrot.slane %v916, 1
        %v976 = vrot.slane %v917, 1
        %v977 = vsel %vm949, %v975, %v976
        %v978 = vrot.slane %v918, 1
        %v979 = vsel %vm949, %v976, %v978
        %v980 = vrot.slane %v919, 1
        %v981 = vrot.slane %v920, 1
        %v982 = vsel %vm949, %v980, %v981
        %v983 = vrot.slane %v921, 1
        %v984 = vsel %vm949, %v981, %v983
        %v985 = vrot.slane %v922, 1
        %v986 = vrot.slane %v923, 1
        %v987 = vsel %vm949, %v985, %v986
        %v988 = vrot.slane %v924, 1
        %v989 = vsel %vm949, %v986, %v988
        %v1006 = vadd.f32 %v880, %v952
        %v1007 = vadd.f32 %v881, %v954
        %v1008 = vadd.f32 %v882, %v957
        %v1009 = vadd.f32 %v883, %v959
        %v1010 = vadd.f32 %v884, %v962
        %v1011 = vadd.f32 %v885, %v964
        %v1012 = vadd.f32 %v886, %v967
        %v1013 = vadd.f32 %v887, %v969
        %v1014 = vadd.f32 %v888, %v972
        %v1015 = vadd.f32 %v889, %v974
        %v1016 = vadd.f32 %v890, %v977
        %v1017 = vadd.f32 %v891, %v979
        %v1018 = vadd.f32 %v892, %v982
        %v1019 = vadd.f32 %v893, %v984
        %v1020 = vadd.f32 %v894, %v987
        %v1021 = vadd.f32 %v895, %v989
        %v1022 = vld [vmem:[%s820 + $0x1] sm:$0x1]
        %v1023 = vlaneseq
        %v1024 = vshrl.u32 %v1023, 7
        %v1025 = vsub.s32 0, %v1024
        %v1026 = vrot.slane %v1022, %v1025
        %v1027 = vmul.f32 %v772, %v1026
        %v1028 = vmul.f32 %v773, %v1026
        %v1029 = vmul.f32 %v774, %v1026
        %v1030 = vmul.f32 %v775, %v1026
        %v1031 = vmul.f32 %v776, %v1026
        %v1032 = vmul.f32 %v777, %v1026
        %v1033 = vmul.f32 %v778, %v1026
        %v1034 = vmul.f32 %v779, %v1026
        %v1035 = vmul.f32 %v780, %v1026
        %v1036 = vmul.f32 %v781, %v1026
        %v1037 = vmul.f32 %v782, %v1026
        %v1038 = vmul.f32 %v783, %v1026
        %v1039 = vmul.f32 %v784, %v1026
        %v1040 = vmul.f32 %v785, %v1026
        %v1041 = vmul.f32 %v786, %v1026
        %v1042 = vmul.f32 %v787, %v1026
        %v1043 = vmul.f32 %v788, %v1026
        %v1044 = vmul.f32 %v789, %v1026
        %v1045 = vmul.f32 %v790, %v1026
        %v1046 = vmul.f32 %v791, %v1026
        %v1047 = vmul.f32 %v792, %v1026
        %v1048 = vmul.f32 %v793, %v1026
        %v1049 = vmul.f32 %v794, %v1026
        %v1050 = vmul.f32 %v795, %v1026
        %v1075 = vrot.slane %v1027, 1
        %v1076 = vrot.slane %v1028, 1
        %v1077 = vsel %vm949, %v1075, %v1076
        %v1078 = vrot.slane %v1029, 1
        %v1079 = vsel %vm949, %v1076, %v1078
        %v1080 = vrot.slane %v1030, 1
        %v1081 = vrot.slane %v1031, 1
        %v1082 = vsel %vm949, %v1080, %v1081
        %v1083 = vrot.slane %v1032, 1
        %v1084 = vsel %vm949, %v1081, %v1083
        %v1085 = vrot.slane %v1033, 1
        %v1086 = vrot.slane %v1034, 1
        %v1087 = vsel %vm949, %v1085, %v1086
        %v1088 = vrot.slane %v1035, 1
        %v1089 = vsel %vm949, %v1086, %v1088
        %v1090 = vrot.slane %v1036, 1
        %v1091 = vrot.slane %v1037, 1
        %v1092 = vsel %vm949, %v1090, %v1091
        %v1093 = vrot.slane %v1038, 1
        %v1094 = vsel %vm949, %v1091, %v1093
        %v1095 = vrot.slane %v1039, 1
        %v1096 = vrot.slane %v1040, 1
        %v1097 = vsel %vm949, %v1095, %v1096
        %v1098 = vrot.slane %v1041, 1
        %v1099 = vsel %vm949, %v1096, %v1098
        %v1100 = vrot.slane %v1042, 1
        %v1101 = vrot.slane %v1043, 1
        %v1102 = vsel %vm949, %v1100, %v1101
        %v1103 = vrot.slane %v1044, 1
        %v1104 = vsel %vm949, %v1101, %v1103
        %v1105 = vrot.slane %v1045, 1
        %v1106 = vrot.slane %v1046, 1
        %v1107 = vsel %vm949, %v1105, %v1106
        %v1108 = vrot.slane %v1047, 1
        %v1109 = vsel %vm949, %v1106, %v1108
        %v1110 = vrot.slane %v1048, 1
        %v1111 = vrot.slane %v1049, 1
        %v1112 = vsel %vm949, %v1110, %v1111
        %v1113 = vrot.slane %v1050, 1
        %v1114 = vsel %vm949, %v1111, %v1113
        %v1131 = vadd.f32 %v1006, %v1077
        %v1132 = vadd.f32 %v1007, %v1079
        %v1133 = vadd.f32 %v1008, %v1082
        %v1134 = vadd.f32 %v1009, %v1084
        %v1135 = vadd.f32 %v1010, %v1087
        %v1136 = vadd.f32 %v1011, %v1089
        %v1137 = vadd.f32 %v1012, %v1092
        %v1138 = vadd.f32 %v1013, %v1094
        %v1139 = vadd.f32 %v1014, %v1097
        %v1140 = vadd.f32 %v1015, %v1099
        %v1141 = vadd.f32 %v1016, %v1102
        %v1142 = vadd.f32 %v1017, %v1104
        %v1143 = vadd.f32 %v1018, %v1107
        %v1144 = vadd.f32 %v1019, %v1109
        %v1145 = vadd.f32 %v1020, %v1112
        %v1146 = vadd.f32 %v1021, %v1114
        %v1147 = vld [vmem:[%s858 + $0x1] sm:$0x1]
        %v1148 = vlaneseq
        %v1149 = vshrl.u32 %v1148, 7
        %v1150 = vsub.s32 0, %v1149
        %v1151 = vrot.slane %v1147, %v1150
        %v1152 = vmul.f32 %v775, %v1151
        %v1153 = vmul.f32 %v776, %v1151
        %v1154 = vmul.f32 %v777, %v1151
        %v1155 = vmul.f32 %v778, %v1151
        %v1156 = vmul.f32 %v779, %v1151
        %v1157 = vmul.f32 %v780, %v1151
        %v1158 = vmul.f32 %v781, %v1151
        %v1159 = vmul.f32 %v782, %v1151
        %v1160 = vmul.f32 %v783, %v1151
        %v1161 = vmul.f32 %v784, %v1151
        %v1162 = vmul.f32 %v785, %v1151
        %v1163 = vmul.f32 %v786, %v1151
        %v1164 = vmul.f32 %v787, %v1151
        %v1165 = vmul.f32 %v788, %v1151
        %v1166 = vmul.f32 %v789, %v1151
        %v1167 = vmul.f32 %v790, %v1151
        %v1168 = vmul.f32 %v791, %v1151
        %v1169 = vmul.f32 %v792, %v1151
        %v1170 = vmul.f32 %v793, %v1151
        %v1171 = vmul.f32 %v794, %v1151
        %v1172 = vmul.f32 %v795, %v1151
        %v1173 = vmul.f32 %v796, %v1151
        %v1174 = vmul.f32 %v797, %v1151
        %v1175 = vmul.f32 %v798, %v1151
        %v1200 = vrot.slane %v1152, 1
        %v1201 = vrot.slane %v1153, 1
        %v1202 = vsel %vm949, %v1200, %v1201
        %v1203 = vrot.slane %v1154, 1
        %v1204 = vsel %vm949, %v1201, %v1203
        %v1205 = vrot.slane %v1155, 1
        %v1206 = vrot.slane %v1156, 1
        %v1207 = vsel %vm949, %v1205, %v1206
        %v1208 = vrot.slane %v1157, 1
        %v1209 = vsel %vm949, %v1206, %v1208
        %v1210 = vrot.slane %v1158, 1
        %v1211 = vrot.slane %v1159, 1
        %v1212 = vsel %vm949, %v1210, %v1211
        %v1213 = vrot.slane %v1160, 1
        %v1214 = vsel %vm949, %v1211, %v1213
        %v1215 = vrot.slane %v1161, 1
        %v1216 = vrot.slane %v1162, 1
        %v1217 = vsel %vm949, %v1215, %v1216
        %v1218 = vrot.slane %v1163, 1
        %v1219 = vsel %vm949, %v1216, %v1218
        %v1220 = vrot.slane %v1164, 1
        %v1221 = vrot.slane %v1165, 1
        %v1222 = vsel %vm949, %v1220, %v1221
        %v1223 = vrot.slane %v1166, 1
        %v1224 = vsel %vm949, %v1221, %v1223
        %v1225 = vrot.slane %v1167, 1
        %v1226 = vrot.slane %v1168, 1
        %v1227 = vsel %vm949, %v1225, %v1226
        %v1228 = vrot.slane %v1169, 1
        %v1229 = vsel %vm949, %v1226, %v1228
        %v1230 = vrot.slane %v1170, 1
        %v1231 = vrot.slane %v1171, 1
        %v1232 = vsel %vm949, %v1230, %v1231
        %v1233 = vrot.slane %v1172, 1
        %v1234 = vsel %vm949, %v1231, %v1233
        %v1235 = vrot.slane %v1173, 1
        %v1236 = vrot.slane %v1174, 1
        %v1237 = vsel %vm949, %v1235, %v1236
        %v1238 = vrot.slane %v1175, 1
        %v1239 = vsel %vm949, %v1236, %v1238
        %v1256 = vadd.f32 %v1131, %v1202
        %v1257 = vadd.f32 %v1132, %v1204
        %v1258 = vadd.f32 %v1133, %v1207
        %v1259 = vadd.f32 %v1134, %v1209
        %v1260 = vadd.f32 %v1135, %v1212
        %v1261 = vadd.f32 %v1136, %v1214
        %v1262 = vadd.f32 %v1137, %v1217
        %v1263 = vadd.f32 %v1138, %v1219
        %v1264 = vadd.f32 %v1139, %v1222
        %v1265 = vadd.f32 %v1140, %v1224
        %v1266 = vadd.f32 %v1141, %v1227
        %v1267 = vadd.f32 %v1142, %v1229
        %v1268 = vadd.f32 %v1143, %v1232
        %v1269 = vadd.f32 %v1144, %v1234
        %v1270 = vadd.f32 %v1145, %v1237
        %v1271 = vadd.f32 %v1146, %v1239
        %v1272 = vld [vmem:[#allocation7 + $0x2] sm:$0x1]
        %v1273 = vlaneseq
        %v1274 = vshrl.u32 %v1273, 7
        %v1275 = vsub.s32 0, %v1274
        %v1276 = vrot.slane %v1272, %v1275
        %v1277 = vmul.f32 %v769, %v1276
        %v1278 = vmul.f32 %v770, %v1276
        %v1279 = vmul.f32 %v771, %v1276
        %v1280 = vmul.f32 %v772, %v1276
        %v1281 = vmul.f32 %v773, %v1276
        %v1282 = vmul.f32 %v774, %v1276
        %v1283 = vmul.f32 %v775, %v1276
        %v1284 = vmul.f32 %v776, %v1276
        %v1285 = vmul.f32 %v777, %v1276
        %v1286 = vmul.f32 %v778, %v1276
        %v1287 = vmul.f32 %v779, %v1276
        %v1288 = vmul.f32 %v780, %v1276
        %v1289 = vmul.f32 %v781, %v1276
        %v1290 = vmul.f32 %v782, %v1276
        %v1291 = vmul.f32 %v783, %v1276
        %v1292 = vmul.f32 %v784, %v1276
        %v1293 = vmul.f32 %v785, %v1276
        %v1294 = vmul.f32 %v786, %v1276
        %v1295 = vmul.f32 %v787, %v1276
        %v1296 = vmul.f32 %v788, %v1276
        %v1297 = vmul.f32 %v789, %v1276
        %v1298 = vmul.f32 %v790, %v1276
        %v1299 = vmul.f32 %v791, %v1276
        %v1300 = vmul.f32 %v792, %v1276
        %vm1325 = vcmask 1045504
        %v1326 = vrot.slane %v1277, 2
        %v1327 = vrot.slane %v1278, 2
        %v1328 = vsel %vm1325, %v1326, %v1327
        %v1329 = vrot.slane %v1279, 2
        %v1330 = vsel %vm1325, %v1327, %v1329
        %v1331 = vrot.slane %v1280, 2
        %v1332 = vrot.slane %v1281, 2
        %v1333 = vsel %vm1325, %v1331, %v1332
        %v1334 = vrot.slane %v1282, 2
        %v1335 = vsel %vm1325, %v1332, %v1334
        %v1336 = vrot.slane %v1283, 2
        %v1337 = vrot.slane %v1284, 2
        %v1338 = vsel %vm1325, %v1336, %v1337
        %v1339 = vrot.slane %v1285, 2
        %v1340 = vsel %vm1325, %v1337, %v1339
        %v1341 = vrot.slane %v1286, 2
        %v1342 = vrot.slane %v1287, 2
        %v1343 = vsel %vm1325, %v1341, %v1342
        %v1344 = vrot.slane %v1288, 2
        %v1345 = vsel %vm1325, %v1342, %v1344
        %v1346 = vrot.slane %v1289, 2
        %v1347 = vrot.slane %v1290, 2
        %v1348 = vsel %vm1325, %v1346, %v1347
        %v1349 = vrot.slane %v1291, 2
        %v1350 = vsel %vm1325, %v1347, %v1349
        %v1351 = vrot.slane %v1292, 2
        %v1352 = vrot.slane %v1293, 2
        %v1353 = vsel %vm1325, %v1351, %v1352
        %v1354 = vrot.slane %v1294, 2
        %v1355 = vsel %vm1325, %v1352, %v1354
        %v1356 = vrot.slane %v1295, 2
        %v1357 = vrot.slane %v1296, 2
        %v1358 = vsel %vm1325, %v1356, %v1357
        %v1359 = vrot.slane %v1297, 2
        %v1360 = vsel %vm1325, %v1357, %v1359
        %v1361 = vrot.slane %v1298, 2
        %v1362 = vrot.slane %v1299, 2
        %v1363 = vsel %vm1325, %v1361, %v1362
        %v1364 = vrot.slane %v1300, 2
        %v1365 = vsel %vm1325, %v1362, %v1364
        %v1382 = vadd.f32 %v1256, %v1328
        %v1383 = vadd.f32 %v1257, %v1330
        %v1384 = vadd.f32 %v1258, %v1333
        %v1385 = vadd.f32 %v1259, %v1335
        %v1386 = vadd.f32 %v1260, %v1338
        %v1387 = vadd.f32 %v1261, %v1340
        %v1388 = vadd.f32 %v1262, %v1343
        %v1389 = vadd.f32 %v1263, %v1345
        %v1390 = vadd.f32 %v1264, %v1348
        %v1391 = vadd.f32 %v1265, %v1350
        %v1392 = vadd.f32 %v1266, %v1353
        %v1393 = vadd.f32 %v1267, %v1355
        %v1394 = vadd.f32 %v1268, %v1358
        %v1395 = vadd.f32 %v1269, %v1360
        %v1396 = vadd.f32 %v1270, %v1363
        %v1397 = vadd.f32 %v1271, %v1365
        %v1398 = vld [vmem:[%s820 + $0x2] sm:$0x1]
        %v1399 = vlaneseq
        %v1400 = vshrl.u32 %v1399, 7
        %v1401 = vsub.s32 0, %v1400
        %v1402 = vrot.slane %v1398, %v1401
        %v1403 = vmul.f32 %v772, %v1402
        %v1404 = vmul.f32 %v773, %v1402
        %v1405 = vmul.f32 %v774, %v1402
        %v1406 = vmul.f32 %v775, %v1402
        %v1407 = vmul.f32 %v776, %v1402
        %v1408 = vmul.f32 %v777, %v1402
        %v1409 = vmul.f32 %v778, %v1402
        %v1410 = vmul.f32 %v779, %v1402
        %v1411 = vmul.f32 %v780, %v1402
        %v1412 = vmul.f32 %v781, %v1402
        %v1413 = vmul.f32 %v782, %v1402
        %v1414 = vmul.f32 %v783, %v1402
        %v1415 = vmul.f32 %v784, %v1402
        %v1416 = vmul.f32 %v785, %v1402
        %v1417 = vmul.f32 %v786, %v1402
        %v1418 = vmul.f32 %v787, %v1402
        %v1419 = vmul.f32 %v788, %v1402
        %v1420 = vmul.f32 %v789, %v1402
        %v1421 = vmul.f32 %v790, %v1402
        %v1422 = vmul.f32 %v791, %v1402
        %v1423 = vmul.f32 %v792, %v1402
        %v1424 = vmul.f32 %v793, %v1402
        %v1425 = vmul.f32 %v794, %v1402
        %v1426 = vmul.f32 %v795, %v1402
        %v1451 = vrot.slane %v1403, 2
        %v1452 = vrot.slane %v1404, 2
        %v1453 = vsel %vm1325, %v1451, %v1452
        %v1454 = vrot.slane %v1405, 2
        %v1455 = vsel %vm1325, %v1452, %v1454
        %v1456 = vrot.slane %v1406, 2
        %v1457 = vrot.slane %v1407, 2
        %v1458 = vsel %vm1325, %v1456, %v1457
        %v1459 = vrot.slane %v1408, 2
        %v1460 = vsel %vm1325, %v1457, %v1459
        %v1461 = vrot.slane %v1409, 2
        %v1462 = vrot.slane %v1410, 2
        %v1463 = vsel %vm1325, %v1461, %v1462
        %v1464 = vrot.slane %v1411, 2
        %v1465 = vsel %vm1325, %v1462, %v1464
        %v1466 = vrot.slane %v1412, 2
        %v1467 = vrot.slane %v1413, 2
        %v1468 = vsel %vm1325, %v1466, %v1467
        %v1469 = vrot.slane %v1414, 2
        %v1470 = vsel %vm1325, %v1467, %v1469
        %v1471 = vrot.slane %v1415, 2
        %v1472 = vrot.slane %v1416, 2
        %v1473 = vsel %vm1325, %v1471, %v1472
        %v1474 = vrot.slane %v1417, 2
        %v1475 = vsel %vm1325, %v1472, %v1474
        %v1476 = vrot.slane %v1418, 2
        %v1477 = vrot.slane %v1419, 2
        %v1478 = vsel %vm1325, %v1476, %v1477
        %v1479 = vrot.slane %v1420, 2
        %v1480 = vsel %vm1325, %v1477, %v1479
        %v1481 = vrot.slane %v1421, 2
        %v1482 = vrot.slane %v1422, 2
        %v1483 = vsel %vm1325, %v1481, %v1482
        %v1484 = vrot.slane %v1423, 2
        %v1485 = vsel %vm1325, %v1482, %v1484
        %v1486 = vrot.slane %v1424, 2
        %v1487 = vrot.slane %v1425, 2
        %v1488 = vsel %vm1325, %v1486, %v1487
        %v1489 = vrot.slane %v1426, 2
        %v1490 = vsel %vm1325, %v1487, %v1489
        %v1507 = vadd.f32 %v1382, %v1453
        %v1508 = vadd.f32 %v1383, %v1455
        %v1509 = vadd.f32 %v1384, %v1458
        %v1510 = vadd.f32 %v1385, %v1460
        %v1511 = vadd.f32 %v1386, %v1463
        %v1512 = vadd.f32 %v1387, %v1465
        %v1513 = vadd.f32 %v1388, %v1468
        %v1514 = vadd.f32 %v1389, %v1470
        %v1515 = vadd.f32 %v1390, %v1473
        %v1516 = vadd.f32 %v1391, %v1475
        %v1517 = vadd.f32 %v1392, %v1478
        %v1518 = vadd.f32 %v1393, %v1480
        %v1519 = vadd.f32 %v1394, %v1483
        %v1520 = vadd.f32 %v1395, %v1485
        %v1521 = vadd.f32 %v1396, %v1488
        %v1522 = vadd.f32 %v1397, %v1490
        %v1523 = vld [vmem:[%s858 + $0x2] sm:$0x1]
        %v1524 = vlaneseq
        %v1525 = vshrl.u32 %v1524, 7
        %v1526 = vsub.s32 0, %v1525
        %v1527 = vrot.slane %v1523, %v1526
        %v1528 = vmul.f32 %v775, %v1527
        %v1529 = vmul.f32 %v776, %v1527
        %v1530 = vmul.f32 %v777, %v1527
        %v1531 = vmul.f32 %v778, %v1527
        %v1532 = vmul.f32 %v779, %v1527
        %v1533 = vmul.f32 %v780, %v1527
        %v1534 = vmul.f32 %v781, %v1527
        %v1535 = vmul.f32 %v782, %v1527
        %v1536 = vmul.f32 %v783, %v1527
        %v1537 = vmul.f32 %v784, %v1527
        %v1538 = vmul.f32 %v785, %v1527
        %v1539 = vmul.f32 %v786, %v1527
        %v1540 = vmul.f32 %v787, %v1527
        %v1541 = vmul.f32 %v788, %v1527
        %v1542 = vmul.f32 %v789, %v1527
        %v1543 = vmul.f32 %v790, %v1527
        %v1544 = vmul.f32 %v791, %v1527
        %v1545 = vmul.f32 %v792, %v1527
        %v1546 = vmul.f32 %v793, %v1527
        %v1547 = vmul.f32 %v794, %v1527
        %v1548 = vmul.f32 %v795, %v1527
        %v1549 = vmul.f32 %v796, %v1527
        %v1550 = vmul.f32 %v797, %v1527
        %v1551 = vmul.f32 %v798, %v1527
        %v1576 = vrot.slane %v1528, 2
        %v1577 = vrot.slane %v1529, 2
        %v1578 = vsel %vm1325, %v1576, %v1577
        %v1579 = vrot.slane %v1530, 2
        %v1580 = vsel %vm1325, %v1577, %v1579
        %v1581 = vrot.slane %v1531, 2
        %v1582 = vrot.slane %v1532, 2
        %v1583 = vsel %vm1325, %v1581, %v1582
        %v1584 = vrot.slane %v1533, 2
        %v1585 = vsel %vm1325, %v1582, %v1584
        %v1586 = vrot.slane %v1534, 2
        %v1587 = vrot.slane %v1535, 2
        %v1588 = vsel %vm1325, %v1586, %v1587
        %v1589 = vrot.slane %v1536, 2
        %v1590 = vsel %vm1325, %v1587, %v1589
        %v1591 = vrot.slane %v1537, 2
        %v1592 = vrot.slane %v1538, 2
        %v1593 = vsel %vm1325, %v1591, %v1592
        %v1594 = vrot.slane %v1539, 2
        %v1595 = vsel %vm1325, %v1592, %v1594
        %v1596 = vrot.slane %v1540, 2
        %v1597 = vrot.slane %v1541, 2
        %v1598 = vsel %vm1325, %v1596, %v1597
        %v1599 = vrot.slane %v1542, 2
        %v1600 = vsel %vm1325, %v1597, %v1599
        %v1601 = vrot.slane %v1543, 2
        %v1602 = vrot.slane %v1544, 2
        %v1603 = vsel %vm1325, %v1601, %v1602
        %v1604 = vrot.slane %v1545, 2
        %v1605 = vsel %vm1325, %v1602, %v1604
        %v1606 = vrot.slane %v1546, 2
        %v1607 = vrot.slane %v1547, 2
        %v1608 = vsel %vm1325, %v1606, %v1607
        %v1609 = vrot.slane %v1548, 2
        %v1610 = vsel %vm1325, %v1607, %v1609
        %v1611 = vrot.slane %v1549, 2
        %v1612 = vrot.slane %v1550, 2
        %v1613 = vsel %vm1325, %v1611, %v1612
        %v1614 = vrot.slane %v1551, 2
        %v1615 = vsel %vm1325, %v1612, %v1614
        %v1632 = vadd.f32 %v1507, %v1578
        %v1633 = vadd.f32 %v1508, %v1580
        %v1634 = vadd.f32 %v1509, %v1583
        %v1635 = vadd.f32 %v1510, %v1585
        %v1636 = vadd.f32 %v1511, %v1588
        %v1637 = vadd.f32 %v1512, %v1590
        %v1638 = vadd.f32 %v1513, %v1593
        %v1639 = vadd.f32 %v1514, %v1595
        %v1640 = vadd.f32 %v1515, %v1598
        %v1641 = vadd.f32 %v1516, %v1600
        %v1642 = vadd.f32 %v1517, %v1603
        %v1643 = vadd.f32 %v1518, %v1605
        %v1644 = vadd.f32 %v1519, %v1608
        %v1645 = vadd.f32 %v1520, %v1610
        %v1646 = vadd.f32 %v1521, %v1613
        %v1647 = vadd.f32 %v1522, %v1615
        %v1648 = vld [vmem:[%s4] sm:$0x1]
        %v1650 = vlaneseq
        %v1651 = vshrl.u32 %v1650, 7
        %v1652 = vsub.s32 0, %v1651
        %v1653 = vrot.slane %v1648, %v1652
        %v1655 = vadd.f32 %v1632, %v1653
        %v1656 = vadd.f32 %v1633, %v1653
        %v1657 = vadd.f32 %v1634, %v1653
        %v1658 = vadd.f32 %v1635, %v1653
        %v1659 = vadd.f32 %v1636, %v1653
        %v1660 = vadd.f32 %v1637, %v1653
        %v1661 = vadd.f32 %v1638, %v1653
        %v1662 = vadd.f32 %v1639, %v1653
        %v1663 = vadd.f32 %v1640, %v1653
        %v1664 = vadd.f32 %v1641, %v1653
        %v1665 = vadd.f32 %v1642, %v1653
        %v1666 = vadd.f32 %v1643, %v1653
        %v1667 = vadd.f32 %v1644, %v1653
        %v1668 = vadd.f32 %v1645, %v1653
        %v1669 = vadd.f32 %v1646, %v1653
        %v1670 = vadd.f32 %v1647, %v1653
        %v1671 = vmax.f32 %v1655, 0.0
        %v1672 = vmax.f32 %v1656, 0.0
        %v1673 = vmax.f32 %v1657, 0.0
        %v1674 = vmax.f32 %v1658, 0.0
        %v1675 = vmax.f32 %v1659, 0.0
        %v1676 = vmax.f32 %v1660, 0.0
        %v1677 = vmax.f32 %v1661, 0.0
        %v1678 = vmax.f32 %v1662, 0.0
        %v1679 = vmax.f32 %v1663, 0.0
        %v1680 = vmax.f32 %v1664, 0.0
        %v1681 = vmax.f32 %v1665, 0.0
        %v1682 = vmax.f32 %v1666, 0.0
        %v1683 = vmax.f32 %v1667, 0.0
        %v1684 = vmax.f32 %v1668, 0.0
        %v1685 = vmax.f32 %v1669, 0.0
        %v1686 = vmax.f32 %v1670, 0.0
        %v1687 = vpack.c.bf16 %v1672, %v1671
        %v1688 = vpack.c.bf16 %v1674, %v1673
        %v1689 = vpack.c.bf16 %v1676, %v1675
        %v1690 = vpack.c.bf16 %v1678, %v1677
        %v1691 = vpack.c.bf16 %v1680, %v1679
        %v1692 = vpack.c.bf16 %v1682, %v1681
        %v1693 = vpack.c.bf16 %v1684, %v1683
        %v1694 = vpack.c.bf16 %v1686, %v1685
        %v1695 = vld [vmem:[#allocation8] sm:$0xf]
        %v1696 = vld [vmem:[#allocation8 + $0x4] sm:$0xf]
        %v1697 = vld [vmem:[#allocation8 + $0x8] sm:$0xf]
        %v1698 = vld [vmem:[#allocation8 + $0xc] sm:$0xf]
        %v1699 = vld [vmem:[#allocation8 + $0x10] sm:$0xf]
        %v1700 = vld [vmem:[#allocation8 + $0x14] sm:$0xf]
        %v1701 = vld [vmem:[#allocation8 + $0x18] sm:$0xf]
        %v1702 = vld [vmem:[#allocation8 + $0x1c] sm:$0xf]
        %v1703 = vld [vmem:[#allocation8 + $0x20] sm:$0xf]
        %v1704 = vld [vmem:[#allocation8 + $0x24] sm:$0xf]
        %v1705 = vld [vmem:[#allocation8 + $0x28] sm:$0xf]
        %v1706 = vld [vmem:[#allocation8 + $0x2c] sm:$0xf]
        %v1707 = vld [vmem:[#allocation8 + $0x30] sm:$0xf]
        %v1708 = vld [vmem:[#allocation8 + $0x34] sm:$0xf]
        %v1709 = vld [vmem:[#allocation8 + $0x38] sm:$0xf]
        %v1710 = vld [vmem:[#allocation8 + $0x3c] sm:$0xf]
        %v1711 = vld [vmem:[%s6] sm:$0x1]
        %v1713 = vlaneseq
        %v1714 = vshrl.u32 %v1713, 7
        %v1715 = vsub.s32 0, %v1714
        %v1716 = vrot.slane %v1711, %v1715
        %v1734 = vunpack.c.l.b16 %v1695
        %v1735 = vunpack.c.l.b16 %v1696
        %v1736 = vunpack.c.l.b16 %v1697
        %v1737 = vunpack.c.l.b16 %v1698
        %v1738 = vunpack.c.l.b16 %v1699
        %v1739 = vunpack.c.l.b16 %v1700
        %v1740 = vunpack.c.l.b16 %v1701
        %v1741 = vunpack.c.l.b16 %v1702
        %v1742 = vunpack.c.l.b16 %v1703
        %v1743 = vunpack.c.l.b16 %v1704
        %v1744 = vunpack.c.l.b16 %v1705
        %v1745 = vunpack.c.l.b16 %v1706
        %v1746 = vunpack.c.l.b16 %v1707
        %v1747 = vunpack.c.l.b16 %v1708
        %v1748 = vunpack.c.l.b16 %v1709
        %v1749 = vunpack.c.l.b16 %v1710
        %v1750 = vpack.c.b16 %v1735, %v1734
        %v1751 = vpack.c.b16 %v1737, %v1736
        %v1752 = vpack.c.b16 %v1739, %v1738
        %v1753 = vpack.c.b16 %v1741, %v1740
        %v1754 = vpack.c.b16 %v1743, %v1742
        %v1755 = vpack.c.b16 %v1745, %v1744
        %v1756 = vpack.c.b16 %v1747, %v1746
        %v1757 = vpack.c.b16 %v1749, %v1748
        %1766 = vmatprep.subr.bf16.mxu0 0
        %1767 = vmatpush1.bf16.msra.mxu0 %v1750
        %1768 = vmatprep.subr.bf16.mxu0 0
        %1769 = vmatpush1.bf16.msra.mxu0 %v1751
        %1770 = vmatprep.subr.bf16.mxu0 0
        %1771 = vmatpush1.bf16.msra.mxu0 %v1752
        %1772 = vmatprep.subr.bf16.mxu0 0
        %1773 = vmatpush1.bf16.msra.mxu0 %v1753
        %1774 = vmatprep.subr.bf16.mxu0 0
        %1775 = vmatpush1.bf16.msra.mxu0 %v1754
        %1776 = vmatprep.subr.bf16.mxu0 0
        %1777 = vmatpush1.bf16.msra.mxu0 %v1755
        %1778 = vmatprep.subr.bf16.mxu0 0
        %1779 = vmatpush1.bf16.msra.mxu0 %v1756
        %1780 = vmatprep.subr.bf16.mxu0 0
        %1781 = vmatpush1.bf16.msra.mxu0 %v1757
        %1782 = vmatprep.subr.bf16.mxu0 0
        %1783 = vmatpush1.bf16.msra.mxu0 0
        %1784 = vmatprep.subr.bf16.mxu0 0
        %1785 = vmatpush1.bf16.msra.mxu0 0
        %1786 = vmatprep.subr.bf16.mxu0 0
        %1787 = vmatpush1.bf16.msra.mxu0 0
        %1788 = vmatprep.subr.bf16.mxu0 0
        %1789 = vmatpush1.bf16.msra.mxu0 0
        %1790 = vmatprep.subr.bf16.mxu0 0
        %1791 = vmatpush1.bf16.msra.mxu0 0
        %1792 = vmatprep.subr.bf16.mxu0 0
        %1793 = vmatpush1.bf16.msra.mxu0 0
        %1794 = vmatprep.subr.bf16.mxu0 0
        %1795 = vmatpush1.bf16.msra.mxu0 0
        %1796 = vmatprep.subr.bf16.mxu0 0
        %1797 = vmatpush1.bf16.msra.mxu0 0
        %1798 = vmatprep.mubr.bf16.mxu0 0
        %1799 = vmatmul.mubr.bf16.gmra.mrb[0].mxu0 %v1687
        %v1800 = vpop.f32.mrb[0].mxu0
        %v1801 = vadd.f32 %v1716, %v1800
        %v1802 = vpop.f32.mrb[0].mxu0
        %v1803 = vpop.f32.mrb[0].mxu0
        %v1804 = vadd.f32 %v1716, %v1803
        %v1805 = vpop.f32.mrb[0].mxu0
        %1806 = vmatprep.mubr.bf16.mxu0 0
        %1807 = vmatmul.mubr.bf16.gmra.mrb[0].mxu0 %v1688
        %v1808 = vpop.f32.mrb[0].mxu0
        %v1809 = vadd.f32 %v1716, %v1808
        %v1810 = vpop.f32.mrb[0].mxu0
        %v1811 = vpop.f32.mrb[0].mxu0
        %v1812 = vadd.f32 %v1716, %v1811
        %v1813 = vpop.f32.mrb[0].mxu0
        %1814 = vmatprep.mubr.bf16.mxu0 0
        %1815 = vmatmul.mubr.bf16.gmra.mrb[0].mxu0 %v1689
        %v1816 = vpop.f32.mrb[0].mxu0
        %v1817 = vadd.f32 %v1716, %v1816
        %v1818 = vpop.f32.mrb[0].mxu0
        %v1819 = vpop.f32.mrb[0].mxu0
        %v1820 = vadd.f32 %v1716, %v1819
        %v1821 = vpop.f32.mrb[0].mxu0
        %1822 = vmatprep.mubr.bf16.mxu0 0
        %1823 = vmatmul.mubr.bf16.gmra.mrb[0].mxu0 %v1690
        %v1824 = vpop.f32.mrb[0].mxu0
        %v1825 = vadd.f32 %v1716, %v1824
        %v1826 = vpop.f32.mrb[0].mxu0
        %v1827 = vpop.f32.mrb[0].mxu0
        %v1828 = vadd.f32 %v1716, %v1827
        %v1829 = vpop.f32.mrb[0].mxu0
        %1830 = vmatprep.mubr.bf16.mxu0 0
        %1831 = vmatmul.mubr.bf16.gmra.mrb[0].mxu0 %v1691
        %v1832 = vpop.f32.mrb[0].mxu0
        %v1833 = vadd.f32 %v1716, %v1832
        %v1834 = vpop.f32.mrb[0].mxu0
        %v1835 = vpop.f32.mrb[0].mxu0
        %v1836 = vadd.f32 %v1716, %v1835
        %v1837 = vpop.f32.mrb[0].mxu0
        %1838 = vmatprep.mubr.bf16.mxu0 0
        %1839 = vmatmul.mubr.bf16.gmra.mrb[0].mxu0 %v1692
        %v1840 = vpop.f32.mrb[0].mxu0
        %v1841 = vadd.f32 %v1716, %v1840
        %v1842 = vpop.f32.mrb[0].mxu0
        %v1843 = vpop.f32.mrb[0].mxu0
        %v1844 = vadd.f32 %v1716, %v1843
        %v1845 = vpop.f32.mrb[0].mxu0
        %1846 = vmatprep.mubr.bf16.mxu0 0
        %1847 = vmatmul.mubr.bf16.gmra.mrb[0].mxu0 %v1693
        %v1848 = vpop.f32.mrb[0].mxu0
        %v1849 = vadd.f32 %v1716, %v1848
        %v1850 = vpop.f32.mrb[0].mxu0
        %v1851 = vpop.f32.mrb[0].mxu0
        %v1852 = vadd.f32 %v1716, %v1851
        %v1853 = vpop.f32.mrb[0].mxu0
        %1854 = vmatprep.mubr.bf16.mxu0 0
        %1855 = vmatmul.mubr.bf16.gmra.mrb[0].mxu0 %v1694
        %v1856 = vpop.f32.mrb[0].mxu0
        %v1857 = vadd.f32 %v1716, %v1856
        %v1858 = vpop.f32.mrb[0].mxu0
        %v1859 = vpop.f32.mrb[0].mxu0
        %v1860 = vadd.f32 %v1716, %v1859
        %v1861 = vpop.f32.mrb[0].mxu0
        %1862 = vdwg.mxu0
        %v1887 = vrot.slane %v363, 1
        %v1888 = vrot.slane %v364, 1
        %v1889 = vsel %vm949, %v1887, %v1888
        %v1890 = vrot.slane %v365, 1
        %v1891 = vsel %vm949, %v1888, %v1890
        %v1892 = vrot.slane %v366, 1
        %v1893 = vrot.slane %v367, 1
        %v1894 = vsel %vm949, %v1892, %v1893
        %v1895 = vrot.slane %v368, 1
        %v1896 = vsel %vm949, %v1893, %v1895
        %v1897 = vrot.slane %v369, 1
        %v1898 = vrot.slane %v370, 1
        %v1899 = vsel %vm949, %v1897, %v1898
        %v1900 = vrot.slane %v371, 1
        %v1901 = vsel %vm949, %v1898, %v1900
        %v1902 = vrot.slane %v372, 1
        %v1903 = vrot.slane %v373, 1
        %v1904 = vsel %vm949, %v1902, %v1903
        %v1905 = vrot.slane %v374, 1
        %v1906 = vsel %vm949, %v1903, %v1905
        %v1907 = vrot.slane %v375, 1
        %v1908 = vrot.slane %v376, 1
        %v1909 = vsel %vm949, %v1907, %v1908
        %v1910 = vrot.slane %v377, 1
        %v1911 = vsel %vm949, %v1908, %v1910
        %v1912 = vrot.slane %v378, 1
        %v1913 = vrot.slane %v379, 1
        %v1914 = vsel %vm949, %v1912, %v1913
        %v1915 = vrot.slane %v380, 1
        %v1916 = vsel %vm949, %v1913, %v1915
        %v1917 = vrot.slane %v381, 1
        %v1918 = vrot.slane %v382, 1
        %v1919 = vsel %vm949, %v1917, %v1918
        %v1920 = vrot.slane %v383, 1
        %v1921 = vsel %vm949, %v1918, %v1920
        %v1922 = vrot.slane %v384, 1
        %v1923 = vrot.slane %v385, 1
        %v1924 = vsel %vm949, %v1922, %v1923
        %v1925 = vrot.slane %v386, 1
        %v1926 = vsel %vm949, %v1923, %v1925
        %v1943 = vadd.f32 %v1801, %v1889
        %v1944 = vadd.f32 %v1804, %v1891
        %v1945 = vadd.f32 %v1809, %v1894
        %v1946 = vadd.f32 %v1812, %v1896
        %v1947 = vadd.f32 %v1817, %v1899
        %v1948 = vadd.f32 %v1820, %v1901
        %v1949 = vadd.f32 %v1825, %v1904
        %v1950 = vadd.f32 %v1828, %v1906
        %v1951 = vadd.f32 %v1833, %v1909
        %v1952 = vadd.f32 %v1836, %v1911
        %v1953 = vadd.f32 %v1841, %v1914
        %v1954 = vadd.f32 %v1844, %v1916
        %v1955 = vadd.f32 %v1849, %v1919
        %v1956 = vadd.f32 %v1852, %v1921
        %v1957 = vadd.f32 %v1857, %v1924
        %v1958 = vadd.f32 %v1860, %v1926
        %v1959 = vmax.f32 %v1943, 0.0
        %v1960 = vmax.f32 %v1944, 0.0
        %v1961 = vmax.f32 %v1945, 0.0
        %v1962 = vmax.f32 %v1946, 0.0
        %v1963 = vmax.f32 %v1947, 0.0
        %v1964 = vmax.f32 %v1948, 0.0
        %v1965 = vmax.f32 %v1949, 0.0
        %v1966 = vmax.f32 %v1950, 0.0
        %v1967 = vmax.f32 %v1951, 0.0
        %v1968 = vmax.f32 %v1952, 0.0
        %v1969 = vmax.f32 %v1953, 0.0
        %v1970 = vmax.f32 %v1954, 0.0
        %v1971 = vmax.f32 %v1955, 0.0
        %v1972 = vmax.f32 %v1956, 0.0
        %v1973 = vmax.f32 %v1957, 0.0
        %v1974 = vmax.f32 %v1958, 0.0
        %1975 = vst [vmem:[%s354] sm:$0xff] %v1959
        %1976 = vst [vmem:[%s354 + $0x8] sm:$0xff] %v1960
        %1977 = vst [vmem:[%s354 + $0x10] sm:$0xff] %v1961
        %1978 = vst [vmem:[%s354 + $0x18] sm:$0xff] %v1962
        %1979 = vst [vmem:[%s354 + $0x20] sm:$0xff] %v1963
        %1980 = vst [vmem:[%s354 + $0x28] sm:$0xff] %v1964
        %1981 = vst [vmem:[%s354 + $0x30] sm:$0xff] %v1965
        %1982 = vst [vmem:[%s354 + $0x38] sm:$0xff] %v1966
        %1983 = vst [vmem:[%s354 + $0x40] sm:$0xff] %v1967
        %1984 = vst [vmem:[%s354 + $0x48] sm:$0xff] %v1968
        %1985 = vst [vmem:[%s354 + $0x50] sm:$0xff] %v1969
        %1986 = vst [vmem:[%s354 + $0x58] sm:$0xff] %v1970
        %1987 = vst [vmem:[%s354 + $0x60] sm:$0xff] %v1971
        %1988 = vst [vmem:[%s354 + $0x68] sm:$0xff] %v1972
        %1989 = vst [vmem:[%s354 + $0x70] sm:$0xff] %v1973
        %1990 = vst [vmem:[%s354 + $0x78] sm:$0xff] %v1974
        %s1991 = sand.u32 %s200, 1
        %s1992 = scalar_lea.sflag [#allocation4], %s1991
        %s1993 = sand.u32 %s200, 1
        %s1994 = smul.addr %s1993, 128
        %s1995 = scalar_lea.vmem [#allocation10], %s1994
        // Predicated region
        $region65: #{tpu_custom_call.1} parent=47 // pred_check
          %p1996 = pneg %p210
        $region66: #{tpu_custom_call.1} parent=47 // pred_check_branch
          %1998 = sbr.rel (%p1996) target = $region68
        $region67: #{tpu_custom_call.1} parent=47 // pred_region
          %s1999 = smul.u32 8, %s31
          %s2001 = ssub.s32 2048, 2048
          %2002 = vsyncadd %s1992, %s2001
          %s2003 = smul.addr %s1999, 2
          %s2004 = smul.addr %s30, 32
          %s2005 = sadd.s32 %s2003, %s2004
          %s2006 = smul.addr %s2005, 128
          %s2007 = scalar_lea.hbm %s7, %s2006
          %s2008 = sshll.u32 %s1995, 4
          %s2009 = int_to_ptr.vmem [resolvable:$true] %s2008
          %2014 = dma.vmem_to_hbm [thread:$0]  %s2009, 2048, %s2007, %s1992, 128, 128, 8
        $region68: #{tpu_custom_call.1} parent=47 // pred_fallthru
          _
      $region48: #{tpu_custom_call.1} parent=5 // pred_fallthru
        _
      %p2015 = scmp.le.s32.totalorder 2, %s21
      // Predicated region
      $region69: #{tpu_custom_call.1} parent=5 // pred_check
        %p2016 = pneg %p2015
      $region70: #{tpu_custom_call.1} parent=5 // pred_check_branch
        %2018 = sbr.rel (%p2016) target = $region72
      $region71: #{tpu_custom_call.1} parent=5 // pred_region
        %s2019 = ssub.s32 %s21, 2
        // Predicated region
        $region73: #{tpu_custom_call.1} parent=71 // pred_check
          %p2020 = pneg %p216
        $region74: #{tpu_custom_call.1} parent=71 // pred_check_branch
          %2022 = sbr.rel (%p2020) target = $region76
        $region75: #{tpu_custom_call.1} parent=71 // pred_region
          %s2023 = sand.u32 %s201, 1
          %s2024 = scalar_lea.sflag [#allocation4], %s2023
          %s2025 = sand.u32 %s201, 1
          %s2026 = smul.addr %s2025, 128
          %s2027 = scalar_lea.vmem [#allocation10], %s2026
          %2028 = dma.done %s2024, 2048
        $region76: #{tpu_custom_call.1} parent=71 // pred_fallthru
          _
      $region72: #{tpu_custom_call.1} parent=5 // pred_fallthru
        _
    $region6: #{tpu_custom_call.1} parent=1 // loop_footer
      %s25 = sadd.s32 1, %s21
    $region7: #{tpu_custom_call.1} parent=1 // loop_footer_branch
      %20 = sbr.rel target = $region3
    $region8: #{tpu_custom_call.1} parent=1 // loop_exit
      _
    %2029 = vsyncpa [#allocation3], 1
    %s2030 = scalar_lea.sflag [#allocation3], 1
    %2031 = vsyncpa %s2030, 1
    %2032 = vsyncpa [#allocation6], 1
    %2033 = vsyncpa [#allocation9], 1
    %2034 = vsyncpa [#allocation4], 1
    %s2035 = scalar_lea.sflag [#allocation4], 1
    %2036 = vsyncpa %s2035, 1

</llo_original>
